<compile_context>
chip_gen: v7x
topology: tpu7x:2x2x1
jax: 0.10.0
libtpu: 0.0.40
codegen_flags: <defaults>
</compile_context>

<pallas_src>
import jax
import jax.numpy as jnp
from jax.experimental import pallas as pl
from jax.experimental.pallas import tpu as pltpu


def _fused_decoder_kernel(x_ref, w1_ref, b1_ref, w2_ref, b2_ref,
                          w3_ref, b3_ref, o_ref, h2_ref):
    """Fused 3-layer MLP.  Grid = (row tiles i, layer-3 column tiles j).

    Layers 1 and 2 run once per row tile (at j == 0); their result is kept in
    VMEM scratch (bf16).  Layer 3 runs per column tile of w3, so w3's DMA
    overlaps with layer-1/2 compute and with layer-3 compute on earlier tiles.
    """
    j = pl.program_id(1)

    @pl.when(j == 0)
    def _():
        # Layer 1: (tm, K0) @ (K0, N1) + b1 -> ReLU    (bf16 MXU, f32 accum)
        h1 = jnp.dot(x_ref[...].astype(jnp.bfloat16), w1_ref[...],
                     preferred_element_type=jnp.float32)
        h1 = jnp.maximum(h1 + b1_ref[...], 0.0)
        # Layer 2: (tm, N1) @ (N1, N2) + b2 -> ReLU
        h2 = jnp.dot(h1.astype(jnp.bfloat16), w2_ref[...],
                     preferred_element_type=jnp.float32)
        h2 = jnp.maximum(h2 + b2_ref[...], 0.0)
        h2_ref[...] = h2.astype(h2_ref.dtype)          # resident for all j

    # Layer 3 column tile: (tm, N2) @ (N2, tn3) + b3
    out = jnp.dot(h2_ref[...], w3_ref[...], preferred_element_type=jnp.float32)
    o_ref[...] = (out + b3_ref[...]).astype(o_ref.dtype)


def _pick_tile(dim, preferred, align):
    """Largest tile <= preferred that divides `dim` and is a multiple of
    `align`; falls back to the full dimension (always a legal block)."""
    if dim <= preferred:
        return dim
    t = (preferred // align) * align
    while t >= align:
        if dim % t == 0:
            return t
        t -= align
    return dim


def fused_decoder(h, w1, b1, w2, b2, w3, b3, *, tm_pref=256, tn3_pref=512):
    """out = relu(relu(h @ w1 + b1) @ w2 + b2) @ w3 + b3, one pallas_call."""
    M, K0 = h.shape
    N1 = w1.shape[1]
    N2 = w2.shape[1]
    N3 = w3.shape[1]
    assert w1.shape == (K0, N1) and b1.shape == (N1,)
    assert w2.shape == (N1, N2) and b2.shape == (N2,)
    assert w3.shape == (N2, N3) and b3.shape == (N3,)

    tm = _pick_tile(M, tm_pref, 8)        # row tile (sublane axis)
    tn3 = _pick_tile(N3, tn3_pref, 128)   # lane-dense w3 / output column tile
    grid = (M // tm, N3 // tn3)

    # bf16 weights (halved HBM traffic, native MXU); f32 bias rows.
    w1b = w1.astype(jnp.bfloat16)
    w2b = w2.astype(jnp.bfloat16)
    w3b = w3.astype(jnp.bfloat16)
    b1r = b1.reshape(1, N1).astype(jnp.float32)
    b2r = b2.reshape(1, N2).astype(jnp.float32)
    b3r = b3.reshape(1, N3).astype(jnp.float32)

    return pl.pallas_call(
        _fused_decoder_kernel,
        out_shape=jax.ShapeDtypeStruct((M, N3), h.dtype),
        grid_spec=pltpu.PrefetchScalarGridSpec(
            num_scalar_prefetch=0,
            grid=grid,
            in_specs=[
                pl.BlockSpec((tm, K0), lambda i, j: (i, 0)),    # x row tile
                pl.BlockSpec((K0, N1), lambda i, j: (0, 0)),    # w1 resident
                pl.BlockSpec((1, N1), lambda i, j: (0, 0)),     # b1 resident
                pl.BlockSpec((N1, N2), lambda i, j: (0, 0)),    # w2 resident
                pl.BlockSpec((1, N2), lambda i, j: (0, 0)),     # b2 resident
                pl.BlockSpec((N2, tn3), lambda i, j: (0, j)),   # w3 col tile
                pl.BlockSpec((1, tn3), lambda i, j: (0, j)),    # b3 col tile
            ],
            out_specs=pl.BlockSpec((tm, tn3), lambda i, j: (i, j)),
            scratch_shapes=[pltpu.VMEM((tm, N2), jnp.bfloat16)],  # h2 resident
        ),
        compiler_params=pltpu.CompilerParams(
            dimension_semantics=("parallel", "arbitrary"),
        ),
    )(h, w1b, b1r, w2b, b2r, w3b, b3r)


def small_decoder_mae_forward(x, params, *, ch=16):
    """SmallDecoderMAE forward: (b, t, e) -> (b, ch, t * (input_size // ch))."""
    b, t, e = x.shape
    w1, b1, w2, b2, w3, b3 = params

    h = x.reshape(b * t, e)                          # 'b t e -> (b t) e'
    h = fused_decoder(h, w1, b1, w2, b2, w3, b3)     # fused 3-layer MLP

    # rearrange '(b t) (ch e2) -> b ch (t e2)' — pure layout, stays in XLA.
    input_size = h.shape[-1]
    e2 = input_size // ch
    return h.reshape(b, t, ch, e2).transpose(0, 2, 1, 3).reshape(b, ch, t * e2)


def reference_forward(x, params, *, ch=16):
    """Pure-JAX f32 reference of the same forward pass."""
    b, t, e = x.shape
    w1, b1, w2, b2, w3, b3 = params
    h = x.reshape(b * t, e)
    h = jnp.maximum(h @ w1 + b1, 0.0)
    h = jnp.maximum(h @ w2 + b2, 0.0)
    h = h @ w3 + b3
    e2 = h.shape[-1] // ch
    return h.reshape(b, t, ch, e2).transpose(0, 2, 1, 3).reshape(b, ch, t * e2)


if __name__ == "__main__":
    # Small shapes consistent with the module:
    #   batch b=2, seq t=8, e = output_size = 128
    #   decoder widths: 128 -> 256 -> ReLU -> 512 -> ReLU -> 1024 (= 16 * 64)
    B, T = 2, 8
    OUTPUT_SIZE = 128
    H1 = OUTPUT_SIZE * 2
    H2 = OUTPUT_SIZE * 4
    INPUT_SIZE = 16 * 64

    key = jax.random.PRNGKey(0)
    kx, kw1, kb1, kw2, kb2, kw3, kb3 = jax.random.split(key, 7)

    def init_linear(kw, kb, fan_in, fan_out):
        s = float(fan_in) ** -0.5            # PyTorch nn.Linear default init scale
        w = jax.random.uniform(kw, (fan_in, fan_out), jnp.float32, -s, s)
        bias = jax.random.uniform(kb, (fan_out,), jnp.float32, -s, s)
        return w, bias

    w1, b1 = init_linear(kw1, kb1, OUTPUT_SIZE, H1)
    w2, b2 = init_linear(kw2, kb2, H1, H2)
    w3, b3 = init_linear(kw3, kb3, H2, INPUT_SIZE)
    params = (w1, b1, w2, b2, w3, b3)

    x = jax.random.normal(kx, (B, T, OUTPUT_SIZE), dtype=jnp.float32)

    out = small_decoder_mae_forward(x, params)
    out = jax.block_until_ready(out)

    ref = reference_forward(x, params)
    assert out.shape == (B, 16, T * (INPUT_SIZE // 16)), out.shape
    max_err = float(jnp.max(jnp.abs(out - ref)))
    assert max_err < 2e-2, f"max abs error {max_err}"

    print("KERNEL_OK")
</pallas_src>

<mosaic_0001>
module attributes {stable_mosaic.version = 11 : i64} {
  func.func @_fused_decoder_kernel(%arg0: i32, %arg1: i32, %arg2: memref<16x128xf32, #tpu.memory_space<vmem>>, %arg3: memref<128x256xbf16, #tpu.memory_space<vmem>>, %arg4: memref<1x256xf32, #tpu.memory_space<vmem>>, %arg5: memref<256x512xbf16, #tpu.memory_space<vmem>>, %arg6: memref<1x512xf32, #tpu.memory_space<vmem>>, %arg7: memref<512x512xbf16, #tpu.memory_space<vmem>>, %arg8: memref<1x512xf32, #tpu.memory_space<vmem>>, %arg9: memref<16x512xf32, #tpu.memory_space<vmem>>, %arg10: memref<16x512xbf16, #tpu.memory_space<vmem>>) attributes {dimension_semantics = [#tpu.dimension_semantics<parallel>, #tpu.dimension_semantics<arbitrary>], iteration_bounds = array<i64: 1, 2>, scalar_prefetch = 0 : i64, scratch_operands = 1 : i64, tpu.core_type = #tpu.core_type<tc>, window_params = [{transform_indices = @transform_0, window_bounds = array<i64: 16, 128>}, {pipeline_mode = #tpu.pipeline_mode<synchronous>, transform_indices = @transform_1, window_bounds = array<i64: 128, 256>}, {pipeline_mode = #tpu.pipeline_mode<synchronous>, transform_indices = @transform_2, window_bounds = array<i64: 1, 256>}, {pipeline_mode = #tpu.pipeline_mode<synchronous>, transform_indices = @transform_3, window_bounds = array<i64: 256, 512>}, {pipeline_mode = #tpu.pipeline_mode<synchronous>, transform_indices = @transform_4, window_bounds = array<i64: 1, 512>}, {transform_indices = @transform_5, window_bounds = array<i64: 512, 512>}, {transform_indices = @transform_6, window_bounds = array<i64: 1, 512>}, {transform_indices = @transform_7, window_bounds = array<i64: 16, 512>}]} {
    %c0_i32 = arith.constant 0 : i32
    %0 = arith.cmpi eq, %arg1, %c0_i32 : i32
    %1 = arith.extui %0 : i1 to i32
    %c0_i32_0 = arith.constant 0 : i32
    %2 = arith.cmpi ne, %1, %c0_i32_0 : i32
    scf.if %2 {
      %c0_8 = arith.constant 0 : index
      %c0_9 = arith.constant 0 : index
      %10 = vector.load %arg2[%c0_8, %c0_9] : memref<16x128xf32, #tpu.memory_space<vmem>>, vector<16x128xf32>
      %11 = arith.truncf %10 : vector<16x128xf32> to vector<16x128xbf16>
      %c0_10 = arith.constant 0 : index
      %c0_11 = arith.constant 0 : index
      %12 = vector.load %arg3[%c0_10, %c0_11] : memref<128x256xbf16, #tpu.memory_space<vmem>>, vector<128x256xbf16>
      %cst_12 = arith.constant dense<0.000000e+00> : vector<16x256xf32>
      %13 = tpu.matmul %11, %12, %cst_12 {dimension_numbers = #tpu.dot_dimension_numbers<[1], [0], [0], [1], [0, 0, 1, 1], [], []>} : vector<16x128xbf16>, vector<128x256xbf16>, vector<16x256xf32> -> vector<16x256xf32>
      %c0_13 = arith.constant 0 : index
      %c0_14 = arith.constant 0 : index
      %14 = vector.load %arg4[%c0_13, %c0_14] : memref<1x256xf32, #tpu.memory_space<vmem>>, vector<1x256xf32>
      %15 = vector.broadcast %14 : vector<1x256xf32> to vector<16x256xf32>
      %16 = arith.addf %13, %15 : vector<16x256xf32>
      %cst_15 = arith.constant 0.000000e+00 : f32
      %17 = vector.broadcast %cst_15 : f32 to vector<16x256xf32>
      %18 = arith.maximumf %16, %17 : vector<16x256xf32>
      %19 = arith.truncf %18 : vector<16x256xf32> to vector<16x256xbf16>
      %c0_16 = arith.constant 0 : index
      %c0_17 = arith.constant 0 : index
      %20 = vector.load %arg5[%c0_16, %c0_17] : memref<256x512xbf16, #tpu.memory_space<vmem>>, vector<256x512xbf16>
      %cst_18 = arith.constant dense<0.000000e+00> : vector<16x512xf32>
      %21 = tpu.matmul %19, %20, %cst_18 {dimension_numbers = #tpu.dot_dimension_numbers<[1], [0], [0], [1], [0, 0, 1, 1], [], []>} : vector<16x256xbf16>, vector<256x512xbf16>, vector<16x512xf32> -> vector<16x512xf32>
      %c0_19 = arith.constant 0 : index
      %c0_20 = arith.constant 0 : index
      %22 = vector.load %arg6[%c0_19, %c0_20] : memref<1x512xf32, #tpu.memory_space<vmem>>, vector<1x512xf32>
      %23 = vector.broadcast %22 : vector<1x512xf32> to vector<16x512xf32>
      %24 = arith.addf %21, %23 : vector<16x512xf32>
      %cst_21 = arith.constant 0.000000e+00 : f32
      %25 = vector.broadcast %cst_21 : f32 to vector<16x512xf32>
      %26 = arith.maximumf %24, %25 : vector<16x512xf32>
      %27 = arith.truncf %26 : vector<16x512xf32> to vector<16x512xbf16>
      %c0_22 = arith.constant 0 : index
      %c0_23 = arith.constant 0 : index
      %28 = vector.load %arg10[%c0_22, %c0_23] : memref<16x512xbf16, #tpu.memory_space<vmem>>, vector<16x512xbf16>
      tpu.vector_store %arg10[%c0_22, %c0_23], %27 {strides = array<i32>} : memref<16x512xbf16, #tpu.memory_space<vmem>>, vector<16x512xbf16>,
    } else {
    }
    %c0 = arith.constant 0 : index
    %c0_1 = arith.constant 0 : index
    %3 = vector.load %arg10[%c0, %c0_1] : memref<16x512xbf16, #tpu.memory_space<vmem>>, vector<16x512xbf16>
    %c0_2 = arith.constant 0 : index
    %c0_3 = arith.constant 0 : index
    %4 = vector.load %arg7[%c0_2, %c0_3] : memref<512x512xbf16, #tpu.memory_space<vmem>>, vector<512x512xbf16>
    %cst = arith.constant dense<0.000000e+00> : vector<16x512xf32>
    %5 = tpu.matmul %3, %4, %cst {dimension_numbers = #tpu.dot_dimension_numbers<[1], [0], [0], [1], [0, 0, 1, 1], [], []>} : vector<16x512xbf16>, vector<512x512xbf16>, vector<16x512xf32> -> vector<16x512xf32>
    %c0_4 = arith.constant 0 : index
    %c0_5 = arith.constant 0 : index
    %6 = vector.load %arg8[%c0_4, %c0_5] : memref<1x512xf32, #tpu.memory_space<vmem>>, vector<1x512xf32>
    %7 = vector.broadcast %6 : vector<1x512xf32> to vector<16x512xf32>
    %8 = arith.addf %5, %7 : vector<16x512xf32>
    %c0_6 = arith.constant 0 : index
    %c0_7 = arith.constant 0 : index
    %9 = vector.load %arg9[%c0_6, %c0_7] : memref<16x512xf32, #tpu.memory_space<vmem>>, vector<16x512xf32>
    tpu.vector_store %arg9[%c0_6, %c0_7], %8 {strides = array<i32>} : memref<16x512xf32, #tpu.memory_space<vmem>>, vector<16x512xf32>,
    return
  }
  func.func @transform_0(%arg0: i32, %arg1: i32) -> (i32, i32) {
    %c0_i32 = arith.constant 0 : i32
    %c0_i32_0 = arith.constant 0 : i32
    return %arg0, %c0_i32 : i32, i32
  }
  func.func @transform_1(%arg0: i32, %arg1: i32) -> (i32, i32) {
    %c0_i32 = arith.constant 0 : i32
    %c0_i32_0 = arith.constant 0 : i32
    %c0_i32_1 = arith.constant 0 : i32
    return %c0_i32, %c0_i32_0 : i32, i32
  }
  func.func @transform_2(%arg0: i32, %arg1: i32) -> (i32, i32) {
    %c0_i32 = arith.constant 0 : i32
    %c0_i32_0 = arith.constant 0 : i32
    %c0_i32_1 = arith.constant 0 : i32
    return %c0_i32, %c0_i32_0 : i32, i32
  }
  func.func @transform_3(%arg0: i32, %arg1: i32) -> (i32, i32) {
    %c0_i32 = arith.constant 0 : i32
    %c0_i32_0 = arith.constant 0 : i32
    %c0_i32_1 = arith.constant 0 : i32
    return %c0_i32, %c0_i32_0 : i32, i32
  }
  func.func @transform_4(%arg0: i32, %arg1: i32) -> (i32, i32) {
    %c0_i32 = arith.constant 0 : i32
    %c0_i32_0 = arith.constant 0 : i32
    %c0_i32_1 = arith.constant 0 : i32
    return %c0_i32, %c0_i32_0 : i32, i32
  }
  func.func @transform_5(%arg0: i32, %arg1: i32) -> (i32, i32) {
    %c0_i32 = arith.constant 0 : i32
    %c0_i32_0 = arith.constant 0 : i32
    return %c0_i32, %arg1 : i32, i32
  }
  func.func @transform_6(%arg0: i32, %arg1: i32) -> (i32, i32) {
    %c0_i32 = arith.constant 0 : i32
    %c0_i32_0 = arith.constant 0 : i32
    return %c0_i32, %arg1 : i32, i32
  }
  func.func @transform_7(%arg0: i32, %arg1: i32) -> (i32, i32) {
    %c0_i32 = arith.constant 0 : i32
    return %arg0, %arg1 : i32, i32
  }
}

</mosaic_0001>

<llo_original>
// kernel: tpu_custom_call.1
$region0: #{tpu_custom_call.1}
  #allocation0 [shape = 'u32[]', space=smem, size = 0x4, offset = 0x4, fixed_abs, tag = 'smem constant byte address 0x4 - core index']
  #allocation1 [shape = 'u32[144,128]{1,0:T(1,128)}', space=vmem, size = 0x12000, scoped, tag = 'internal scratch']
  #allocation2 [shape = 'bf16[16,512]{1,0:T(16,128)(2,1)}', space=vmem, size = 0x4000, scoped, tag = 'scratch operand']
  %s0 = inlined_call_operand.hbm [shape: f32[16,128], index: 0, kind: input, shape index: {}]
  %s1 = inlined_call_operand.hbm [shape: bf16[128,256], index: 1, kind: input, shape index: {}]
  %s2 = inlined_call_operand.vmem [shape: f32[1,256], index: 2, kind: input, shape index: {}]
  %s3 = inlined_call_operand.hbm [shape: bf16[256,512], index: 3, kind: input, shape index: {}]
  %s4 = inlined_call_operand.vmem [shape: f32[1,512], index: 4, kind: input, shape index: {}]
  %s5 = inlined_call_operand.hbm [shape: bf16[512,1024], index: 5, kind: input, shape index: {}]
  %s6 = inlined_call_operand.vmem [shape: f32[1,1024], index: 6, kind: input, shape index: {}]
  %s7 = inlined_call_operand.hbm [shape: f32[16,1024], index: 7, kind: output, shape index: {}]
  %s8 = sld [smem:[#allocation0]]
  $region81: #{tpu_custom_call.1} parent=0
    _
  %s10 = ssub.s32 1, %s8
  %s11 = scalar_select 0, %s10, %s8
  $region1: #{tpu_custom_call.1} parent=0
    #allocation3 [shape = 'u8[8192]{0}', space=vmem, size = 0x2000, scoped, tag = 'input window, operand 0, single buffered']
    #allocation4 [shape = 's32[2]{0}', space=sflag, size = 0x8, scoped, tag = 'scoped memory for tpu_custom_call.1']
    #allocation5 [shape = 's32[2]{0}', space=sflag, size = 0x8, scoped, tag = 'scoped memory for tpu_custom_call.1']
    #allocation6 [shape = 'u8[65536]{0}', space=vmem, size = 0x10000, scoped, tag = 'input window, operand 1, single buffered']
    #allocation7 [shape = 's32[1]{0}', space=sflag, size = 0x4, scoped, tag = 'scoped memory for tpu_custom_call.1']
    #allocation8 [shape = 'u8[262144]{0}', space=vmem, size = 0x40000, scoped, tag = 'input window, operand 3, single buffered']
    #allocation9 [shape = 'u8[1048576]{0}', space=vmem, size = 0x100000, scoped, tag = 'input window, operand 5']
    #allocation10 [shape = 's32[2]{0}', space=sflag, size = 0x8, scoped, tag = 'scoped memory for tpu_custom_call.1']
    #allocation11 [shape = 'u8[65536]{0}', space=vmem, size = 0x10000, scoped, tag = 'output window, operand 0']
    %12 = vsyncpa [#allocation4], 0
    %13 = vsyncpa [#allocation7], 0
    %14 = vsyncpa [#allocation10], 0
    %s15 = scalar_lea.sflag [#allocation10], 1
    %16 = vsyncpa %s15, 0
    %17 = vsyncpa [#allocation5], 0
    %s18 = scalar_lea.sflag [#allocation5], 1
    %19 = vsyncpa %s18, 0
    loop: start=0, step=1, limit=4
    $region2: #{tpu_custom_call.1} parent=1 // loop_pre_header
      _
    $region3: #{tpu_custom_call.1} parent=1 // loop_header
      %s21 = sphi 0, %s25
      %p22 = scmp.ge.s32.totalorder %s21, 4
      %s28 = sphi 0, %s40
      %s29 = sphi 0, %s36
      %s30 = sphi 0, %s28
      %s31 = sphi 0, %s29
      %s32 = sphi 0, %s30
      %s33 = sphi 0, %s31
      %s43 = sphi 0, %s45
      %s46 = sphi 0, %s43
      %s47 = sphi 0, %s46
      %s63 = sphi 0, %s47
      %s67 = sphi 0, %s67
      %s69 = sphi 0, %s67
      %s70 = sphi 0, %s69
      %s84 = sphi 0, %s70
      %s88 = sphi 0, %s88
      %s90 = sphi 0, %s88
      %s91 = sphi 0, %s90
      %s105 = sphi 0, %s91
      %s109 = sphi 0, %s109
      %s111 = sphi 0, %s109
      %s112 = sphi 0, %s111
      %s126 = sphi 0, %s112
      %s130 = sphi 0, %s130
      %s132 = sphi 0, %s130
      %s133 = sphi 0, %s132
      %s147 = sphi 0, %s133
      %s153 = sphi 0, %s155
      %s156 = sphi 0, %s153
      %s157 = sphi 0, %s156
      %s173 = sphi 0, %s157
      %s179 = sphi 0, %s181
      %s182 = sphi 0, %s179
      %s183 = sphi 0, %s182
      %s199 = sphi 0, %s183
      %s207 = sphi 0, %s209
      %s210 = sphi 0, %s207
      %s211 = sphi 0, %s210
      %s227 = sphi 0, %s211
    $region4: #{tpu_custom_call.1} parent=1 // loop_header_branch
      %24 = sbr.rel (%p22) target = $region8
    $region5: #{tpu_custom_call.1} parent=1 // loop_body
      %s26 = ssub.s32 %s21, 1
      %s27 = ssub.s32 %s21, 2
      %s34 = sadd.s32 1, %s29
      %p35 = scmp.ge.s32.totalorder %s34, 2
      %s36 = scalar_select %p35, 0, %s34
      %s37 = sadd.s32 1, %s28
      %s38 = scalar_select %p35, %s37, %s28
      %p39 = scmp.ge.s32.totalorder %s38, 1
      %s40 = scalar_select %p39, 0, %s38
      %s41 = ssub.s32 %s28, %s40
      %p42 = scmp.eq.s32.totalorder %s41, 0
      %s44 = sadd.s32 %s43, 1
      %s45 = scalar_select %p42, %s43, %s44
      %p48 = pneg %p42
      %p49 = scmp.eq.s32.totalorder %s21, 1
      %p50 = por %p48, %p49
      %p51 = scmp.ne.s32.totalorder %s43, %s46
      %p52 = scmp.eq.s32.totalorder %s21, 0
      %p53 = por %p51, %p52
      %p54 = scmp.ne.s32.totalorder %s43, %s46
      %p55 = scmp.eq.s32.totalorder %s26, 1
      %p56 = por %p54, %p55
      %p57 = scmp.ne.s32.totalorder %s46, %s47
      %p58 = scmp.eq.s32.totalorder %s26, 0
      %p59 = por %p57, %p58
      %p60 = scmp.ne.s32.totalorder %s46, %s47
      %p61 = scmp.eq.s32.totalorder %s27, 1
      %p62 = por %p60, %p61
      %p64 = scmp.ne.s32.totalorder %s47, %s63
      %p65 = scmp.eq.s32.totalorder %s27, 0
      %p66 = por %p64, %p65
      %s68 = sadd.s32 %s67, 1
      %p71 = scmp.eq.s32.totalorder %s21, 1
      %p72 = scmp.ne.s32.totalorder %s67, %s69
      %p73 = scmp.eq.s32.totalorder %s21, 0
      %p74 = por %p72, %p73
      %p75 = scmp.ne.s32.totalorder %s67, %s69
      %p76 = scmp.eq.s32.totalorder %s26, 1
      %p77 = por %p75, %p76
      %p78 = scmp.ne.s32.totalorder %s69, %s70
      %p79 = scmp.eq.s32.totalorder %s26, 0
      %p80 = por %p78, %p79
      %p81 = scmp.ne.s32.totalorder %s69, %s70
      %p82 = scmp.eq.s32.totalorder %s27, 1
      %p83 = por %p81, %p82
      %p85 = scmp.ne.s32.totalorder %s70, %s84
      %p86 = scmp.eq.s32.totalorder %s27, 0
      %p87 = por %p85, %p86
      %s89 = sadd.s32 %s88, 1
      %p92 = scmp.eq.s32.totalorder %s21, 1
      %p93 = scmp.ne.s32.totalorder %s88, %s90
      %p94 = scmp.eq.s32.totalorder %s21, 0
      %p95 = por %p93, %p94
      %p96 = scmp.ne.s32.totalorder %s88, %s90
      %p97 = scmp.eq.s32.totalorder %s26, 1
      %p98 = por %p96, %p97
      %p99 = scmp.ne.s32.totalorder %s90, %s91
      %p100 = scmp.eq.s32.totalorder %s26, 0
      %p101 = por %p99, %p100
      %p102 = scmp.ne.s32.totalorder %s90, %s91
      %p103 = scmp.eq.s32.totalorder %s27, 1
      %p104 = por %p102, %p103
      %p106 = scmp.ne.s32.totalorder %s91, %s105
      %p107 = scmp.eq.s32.totalorder %s27, 0
      %p108 = por %p106, %p107
      %s110 = sadd.s32 %s109, 1
      %p113 = scmp.eq.s32.totalorder %s21, 1
      %p114 = scmp.ne.s32.totalorder %s109, %s111
      %p115 = scmp.eq.s32.totalorder %s21, 0
      %p116 = por %p114, %p115
      %p117 = scmp.ne.s32.totalorder %s109, %s111
      %p118 = scmp.eq.s32.totalorder %s26, 1
      %p119 = por %p117, %p118
      %p120 = scmp.ne.s32.totalorder %s111, %s112
      %p121 = scmp.eq.s32.totalorder %s26, 0
      %p122 = por %p120, %p121
      %p123 = scmp.ne.s32.totalorder %s111, %s112
      %p124 = scmp.eq.s32.totalorder %s27, 1
      %p125 = por %p123, %p124
      %p127 = scmp.ne.s32.totalorder %s112, %s126
      %p128 = scmp.eq.s32.totalorder %s27, 0
      %p129 = por %p127, %p128
      %s131 = sadd.s32 %s130, 1
      %p134 = scmp.eq.s32.totalorder %s21, 1
      %p135 = scmp.ne.s32.totalorder %s130, %s132
      %p136 = scmp.eq.s32.totalorder %s21, 0
      %p137 = por %p135, %p136
      %p138 = scmp.ne.s32.totalorder %s130, %s132
      %p139 = scmp.eq.s32.totalorder %s26, 1
      %p140 = por %p138, %p139
      %p141 = scmp.ne.s32.totalorder %s132, %s133
      %p142 = scmp.eq.s32.totalorder %s26, 0
      %p143 = por %p141, %p142
      %p144 = scmp.ne.s32.totalorder %s132, %s133
      %p145 = scmp.eq.s32.totalorder %s27, 1
      %p146 = por %p144, %p145
      %p148 = scmp.ne.s32.totalorder %s133, %s147
      %p149 = scmp.eq.s32.totalorder %s27, 0
      %p150 = por %p148, %p149
      %s151 = ssub.s32 %s29, %s36
      %p152 = scmp.eq.s32.totalorder %s151, 0
      %s154 = sadd.s32 %s153, 1
      %s155 = scalar_select %p152, %s153, %s154
      %p158 = pneg %p152
      %p159 = scmp.eq.s32.totalorder %s21, 1
      %p160 = por %p158, %p159
      %p161 = scmp.ne.s32.totalorder %s153, %s156
      %p162 = scmp.eq.s32.totalorder %s21, 0
      %p163 = por %p161, %p162
      %p164 = scmp.ne.s32.totalorder %s153, %s156
      %p165 = scmp.eq.s32.totalorder %s26, 1
      %p166 = por %p164, %p165
      %p167 = scmp.ne.s32.totalorder %s156, %s157
      %p168 = scmp.eq.s32.totalorder %s26, 0
      %p169 = por %p167, %p168
      %p170 = scmp.ne.s32.totalorder %s156, %s157
      %p171 = scmp.eq.s32.totalorder %s27, 1
      %p172 = por %p170, %p171
      %p174 = scmp.ne.s32.totalorder %s157, %s173
      %p175 = scmp.eq.s32.totalorder %s27, 0
      %p176 = por %p174, %p175
      %s177 = ssub.s32 %s29, %s36
      %p178 = scmp.eq.s32.totalorder %s177, 0
      %s180 = sadd.s32 %s179, 1
      %s181 = scalar_select %p178, %s179, %s180
      %p184 = pneg %p178
      %p185 = scmp.eq.s32.totalorder %s21, 1
      %p186 = por %p184, %p185
      %p187 = scmp.ne.s32.totalorder %s179, %s182
      %p188 = scmp.eq.s32.totalorder %s21, 0
      %p189 = por %p187, %p188
      %p190 = scmp.ne.s32.totalorder %s179, %s182
      %p191 = scmp.eq.s32.totalorder %s26, 1
      %p192 = por %p190, %p191
      %p193 = scmp.ne.s32.totalorder %s182, %s183
      %p194 = scmp.eq.s32.totalorder %s26, 0
      %p195 = por %p193, %p194
      %p196 = scmp.ne.s32.totalorder %s182, %s183
      %p197 = scmp.eq.s32.totalorder %s27, 1
      %p198 = por %p196, %p197
      %p200 = scmp.ne.s32.totalorder %s183, %s199
      %p201 = scmp.eq.s32.totalorder %s27, 0
      %p202 = por %p200, %p201
      %s203 = ssub.s32 %s28, %s40
      %s204 = ssub.s32 %s29, %s36
      %s205 = sor.u32 %s203, %s204
      %p206 = scmp.eq.s32.totalorder %s205, 0
      %s208 = sadd.s32 %s207, 1
      %s209 = scalar_select %p206, %s207, %s208
      %p212 = pneg %p206
      %p213 = scmp.eq.s32.totalorder %s21, 1
      %p214 = por %p212, %p213
      %p215 = scmp.ne.s32.totalorder %s207, %s210
      %p216 = scmp.eq.s32.totalorder %s21, 0
      %p217 = por %p215, %p216
      %p218 = scmp.ne.s32.totalorder %s207, %s210
      %p219 = scmp.eq.s32.totalorder %s26, 1
      %p220 = por %p218, %p219
      %p221 = scmp.ne.s32.totalorder %s210, %s211
      %p222 = scmp.eq.s32.totalorder %s26, 0
      %p223 = por %p221, %p222
      %p224 = scmp.ne.s32.totalorder %s210, %s211
      %p225 = scmp.eq.s32.totalorder %s27, 1
      %p226 = por %p224, %p225
      %p228 = scmp.ne.s32.totalorder %s211, %s227
      %p229 = scmp.eq.s32.totalorder %s27, 0
      %p230 = por %p228, %p229
      %p231 = scmp.le.s32.totalorder 1, %s21
      %p232 = scmp.lt.s32.totalorder %s21, 3
      %p233 = pnand %p231, %p232
      %p234 = pneg %p233
      // Predicated region
      $region9: #{tpu_custom_call.1} parent=5 // pred_check
        _
      $region10: #{tpu_custom_call.1} parent=5 // pred_check_branch
        %236 = sbr.rel (%p233) target = $region12
      $region11: #{tpu_custom_call.1} parent=5 // pred_region
        %s237 = ssub.s32 %s21, 1
        // Predicated region
        $region13: #{tpu_custom_call.1} parent=11 // pred_check
          %p238 = pneg %p59
        $region14: #{tpu_custom_call.1} parent=11 // pred_check_branch
          %240 = sbr.rel (%p238) target = $region16
        $region15: #{tpu_custom_call.1} parent=11 // pred_region
          %s241 = smul.u32 2, %s30
          %s243 = ssub.s32 256, 256
          %244 = vsyncadd [#allocation4], %s243
          %s245 = smul.addr %s241, 128
          %s246 = scalar_lea.hbm %s0, %s245
          %s247 = sshll.u32 [#allocation3], 4
          %s248 = int_to_ptr.vmem [resolvable:$true] %s247
          %253 = dma.hbm_to_vmem [thread:$0]  %s246, 256, %s248, [#allocation4], 128, 128, 8
        $region16: #{tpu_custom_call.1} parent=11 // pred_fallthru
          _
        // Predicated region
        $region17: #{tpu_custom_call.1} parent=11 // pred_check
          %p254 = pneg %p80
        $region18: #{tpu_custom_call.1} parent=11 // pred_check_branch
          %256 = sbr.rel (%p254) target = $region20
        $region19: #{tpu_custom_call.1} parent=11 // pred_region
          %s258 = ssub.s32 2048, 2048
          %259 = vsyncadd [#allocation7], %s258
          %s260 = sshll.u32 [#allocation6], 4
          %s261 = int_to_ptr.vmem [resolvable:$true] %s260
          %266 = dma.hbm_to_vmem [thread:$0]  %s1, 2048, %s261, [#allocation7], 128, 128, 8
        $region20: #{tpu_custom_call.1} parent=11 // pred_fallthru
          _
        // Predicated region
        $region21: #{tpu_custom_call.1} parent=11 // pred_check
          %p267 = pneg %p101
        $region22: #{tpu_custom_call.1} parent=11 // pred_check_branch
          %269 = sbr.rel (%p267) target = $region24
        $region23: #{tpu_custom_call.1} parent=11 // pred_region
          _
        $region24: #{tpu_custom_call.1} parent=11 // pred_fallthru
          _
        // Predicated region
        $region25: #{tpu_custom_call.1} parent=11 // pred_check
          %p270 = pneg %p122
        $region26: #{tpu_custom_call.1} parent=11 // pred_check_branch
          %272 = sbr.rel (%p270) target = $region28
        $region27: #{tpu_custom_call.1} parent=11 // pred_region
          %s274 = ssub.s32 8192, 8192
          %275 = vsyncadd [#allocation7], %s274
          %s276 = sshll.u32 [#allocation8], 4
          %s277 = int_to_ptr.vmem [resolvable:$true] %s276
          %282 = dma.hbm_to_vmem [thread:$0]  %s3, 8192, %s277, [#allocation7], 256, 256, 16
        $region28: #{tpu_custom_call.1} parent=11 // pred_fallthru
          _
        // Predicated region
        $region29: #{tpu_custom_call.1} parent=11 // pred_check
          %p283 = pneg %p143
        $region30: #{tpu_custom_call.1} parent=11 // pred_check_branch
          %285 = sbr.rel (%p283) target = $region32
        $region31: #{tpu_custom_call.1} parent=11 // pred_region
          _
        $region32: #{tpu_custom_call.1} parent=11 // pred_fallthru
          _
      $region12: #{tpu_custom_call.1} parent=5 // pred_fallthru
        _
      %p286 = scmp.lt.s32.totalorder %s21, 2
      // Predicated region
      $region33: #{tpu_custom_call.1} parent=5 // pred_check
        %p287 = pneg %p286
      $region34: #{tpu_custom_call.1} parent=5 // pred_check_branch
        %289 = sbr.rel (%p287) target = $region36
      $region35: #{tpu_custom_call.1} parent=5 // pred_region
        // Predicated region
        $region37: #{tpu_custom_call.1} parent=35 // pred_check
          %p290 = pneg %p163
        $region38: #{tpu_custom_call.1} parent=35 // pred_check_branch
          %292 = sbr.rel (%p290) target = $region40
        $region39: #{tpu_custom_call.1} parent=35 // pred_region
          %s293 = sand.u32 %s153, 1
          %s294 = scalar_lea.sflag [#allocation10], %s293
          %s295 = sand.u32 %s153, 1
          %s296 = smul.addr %s295, 1024
          %s297 = scalar_lea.vmem [#allocation9], %s296
          %s298 = smul.u32 4, %s29
          %s300 = ssub.s32 16384, 16384
          %301 = vsyncadd %s294, %s300
          %s302 = smul.addr %s298, 64
          %s303 = scalar_lea.hbm %s5, %s302
          %s304 = sshll.u32 %s297, 4
          %s305 = int_to_ptr.vmem [resolvable:$true] %s304
          %310 = dma.hbm_to_vmem [thread:$0]  %s303, 16384, %s305, %s294, 512, 256, 16
        $region40: #{tpu_custom_call.1} parent=35 // pred_fallthru
          _
        // Predicated region
        $region41: #{tpu_custom_call.1} parent=35 // pred_check
          %p311 = pneg %p189
        $region42: #{tpu_custom_call.1} parent=35 // pred_check_branch
          %313 = sbr.rel (%p311) target = $region44
        $region43: #{tpu_custom_call.1} parent=35 // pred_region
          %s314 = smul.u32 4, %s29
          %p315 = scmp.lt.s32.totalorder %s314, 7
          %s316 = scalar_select %p315, %s314, 7
          %s317 = scalar_lea.vmem %s6, %s316
          %s318 = smul.u32 4, %s29
        $region44: #{tpu_custom_call.1} parent=35 // pred_fallthru
          _
      $region36: #{tpu_custom_call.1} parent=5 // pred_fallthru
        _
      %p319 = scmp.le.s32.totalorder 1, %s21
      %p320 = scmp.lt.s32.totalorder %s21, 3
      %p321 = pnand %p319, %p320
      %p322 = pneg %p321
      // Predicated region
      $region45: #{tpu_custom_call.1} parent=5 // pred_check
        _
      $region46: #{tpu_custom_call.1} parent=5 // pred_check_branch
        %324 = sbr.rel (%p321) target = $region48
      $region47: #{tpu_custom_call.1} parent=5 // pred_region
        %s325 = ssub.s32 %s21, 1
        // Predicated region
        $region49: #{tpu_custom_call.1} parent=47 // pred_check
          %p326 = pneg %p59
        $region50: #{tpu_custom_call.1} parent=47 // pred_check_branch
          %328 = sbr.rel (%p326) target = $region52
        $region51: #{tpu_custom_call.1} parent=47 // pred_region
          %329 = dma.done [#allocation4], 256
        $region52: #{tpu_custom_call.1} parent=47 // pred_fallthru
          _
        // Predicated region
        $region53: #{tpu_custom_call.1} parent=47 // pred_check
          %p330 = pneg %p80
        $region54: #{tpu_custom_call.1} parent=47 // pred_check_branch
          %332 = sbr.rel (%p330) target = $region56
        $region55: #{tpu_custom_call.1} parent=47 // pred_region
          %333 = dma.done [#allocation7], 2048
        $region56: #{tpu_custom_call.1} parent=47 // pred_fallthru
          _
        // Predicated region
        $region57: #{tpu_custom_call.1} parent=47 // pred_check
          %p334 = pneg %p122
        $region58: #{tpu_custom_call.1} parent=47 // pred_check_branch
          %336 = sbr.rel (%p334) target = $region60
        $region59: #{tpu_custom_call.1} parent=47 // pred_region
          %337 = dma.done [#allocation7], 8192
        $region60: #{tpu_custom_call.1} parent=47 // pred_fallthru
          _
        %s338 = sand.u32 %s156, 1
        %s339 = scalar_lea.sflag [#allocation10], %s338
        %s340 = sand.u32 %s156, 1
        %s341 = smul.addr %s340, 1024
        %s342 = scalar_lea.vmem [#allocation9], %s341
        // Predicated region
        $region61: #{tpu_custom_call.1} parent=47 // pred_check
          %p343 = pneg %p169
        $region62: #{tpu_custom_call.1} parent=47 // pred_check_branch
          %345 = sbr.rel (%p343) target = $region64
        $region63: #{tpu_custom_call.1} parent=47 // pred_region
          %346 = dma.done %s339, 16384
        $region64: #{tpu_custom_call.1} parent=47 // pred_fallthru
          _
        %p347 = pneg %p59
        %p348 = pneg %p56
        %p349 = pneg %p80
        %p350 = pneg %p77
        %p351 = pneg %p101
        %p352 = pneg %p98
        %p353 = pneg %p122
        %p354 = pneg %p119
        %p355 = pneg %p143
        %p356 = pneg %p140
        %s357 = sand.u32 %s156, 1
        %s358 = scalar_lea.sflag [#allocation10], %s357
        %s359 = sand.u32 %s156, 1
        %s360 = smul.addr %s359, 1024
        %s361 = scalar_lea.vmem [#allocation9], %s360
        %p362 = pneg %p169
        %p363 = pneg %p166
        %s364 = smul.u32 4, %s31
        %p365 = scmp.lt.s32.totalorder %s364, 7
        %s366 = scalar_select %p365, %s364, 7
        %s367 = scalar_lea.vmem %s6, %s366
        %p368 = pneg %p195
        %p369 = pneg %p192
        %p370 = pneg %p223
        %p371 = pneg %p220
        %s372 = sand.u32 %s210, 1
        %s373 = scalar_lea.sflag [#allocation5], %s372
        %s374 = sand.u32 %s210, 1
        %s375 = smul.addr %s374, 64
        %s376 = scalar_lea.vmem [#allocation11], %s375
        %s377 = smul.u32 2, %s30
        %s378 = smul.u32 4, %s31
        %s379 = smul.u32 4, %s31
        %p380 = scmp.lt.s32.totalorder %s379, 7
        %s381 = scalar_select %p380, %s379, 7
        %s382 = scalar_lea.vmem %s6, %s381
        %s383 = smul.u32 4, %s31
        %s384 = smul.u32 2, %s30
        %s385 = smul.u32 4, %s31
        %p387 = scmp.eq.s32.totalorder %s31, 0
        // Predicated region
        $region65: #{tpu_custom_call.1} parent=47 // pred_check
          %p388 = pneg %p387
        $region66: #{tpu_custom_call.1} parent=47 // pred_check_branch
          %390 = sbr.rel (%p388) target = $region68
        $region67: #{tpu_custom_call.1} parent=47 // pred_region
          %v391 = vld [vmem:[#allocation3] sm:$0xff]
          %v392 = vld [vmem:[#allocation3 + $0x8] sm:$0xff]
          %v393 = vpack.c.bf16 %v392, %v391
          %v394 = vld [vmem:[#allocation6] sm:$0xff]
          %v395 = vld [vmem:[#allocation6 + $0x8] sm:$0xff]
          %v396 = vld [vmem:[#allocation6 + $0x10] sm:$0xff]
          %v397 = vld [vmem:[#allocation6 + $0x18] sm:$0xff]
          %v398 = vld [vmem:[#allocation6 + $0x20] sm:$0xff]
          %v399 = vld [vmem:[#allocation6 + $0x28] sm:$0xff]
          %v400 = vld [vmem:[#allocation6 + $0x30] sm:$0xff]
          %v401 = vld [vmem:[#allocation6 + $0x38] sm:$0xff]
          %v402 = vld [vmem:[#allocation6 + $0x40] sm:$0xff]
          %v403 = vld [vmem:[#allocation6 + $0x48] sm:$0xff]
          %v404 = vld [vmem:[#allocation6 + $0x50] sm:$0xff]
          %v405 = vld [vmem:[#allocation6 + $0x58] sm:$0xff]
          %v406 = vld [vmem:[#allocation6 + $0x60] sm:$0xff]
          %v407 = vld [vmem:[#allocation6 + $0x68] sm:$0xff]
          %v408 = vld [vmem:[#allocation6 + $0x70] sm:$0xff]
          %v409 = vld [vmem:[#allocation6 + $0x78] sm:$0xff]
          %v410 = vld [vmem:[%s2] sm:$0x3]
          %v412 = vlaneseq
          %v413 = vshrl.u32 %v412, 7
          %v414 = vsub.s32 0, %v413
          %v415 = vrot.slane %v410, %v414
          %v416 = vlaneseq
          %v417 = vshrl.u32 %v416, 7
          %v418 = vsub.s32 1, %v417
          %v419 = vrot.slane %v410, %v418
          %v438 = vunpack.c.l.b16 %v394
          %v439 = vunpack.c.h.b16 %v394
          %v440 = vunpack.c.l.b16 %v395
          %v441 = vunpack.c.h.b16 %v395
          %v442 = vunpack.c.l.b16 %v396
          %v443 = vunpack.c.h.b16 %v396
          %v444 = vunpack.c.l.b16 %v397
          %v445 = vunpack.c.h.b16 %v397
          %v446 = vunpack.c.l.b16 %v398
          %v447 = vunpack.c.h.b16 %v398
          %v448 = vunpack.c.l.b16 %v399
          %v449 = vunpack.c.h.b16 %v399
          %v450 = vunpack.c.l.b16 %v400
          %v451 = vunpack.c.h.b16 %v400
          %v452 = vunpack.c.l.b16 %v401
          %v453 = vunpack.c.h.b16 %v401
          %v454 = vunpack.c.l.b16 %v402
          %v455 = vunpack.c.h.b16 %v402
          %v456 = vunpack.c.l.b16 %v403
          %v457 = vunpack.c.h.b16 %v403
          %v458 = vunpack.c.l.b16 %v404
          %v459 = vunpack.c.h.b16 %v404
          %v460 = vunpack.c.l.b16 %v405
          %v461 = vunpack.c.h.b16 %v405
          %v462 = vunpack.c.l.b16 %v406
          %v463 = vunpack.c.h.b16 %v406
          %v464 = vunpack.c.l.b16 %v407
          %v465 = vunpack.c.h.b16 %v407
          %v466 = vunpack.c.l.b16 %v408
          %v467 = vunpack.c.h.b16 %v408
          %v468 = vunpack.c.l.b16 %v409
          %v469 = vunpack.c.h.b16 %v409
          %v470 = vpack.c.b16 %v440, %v438
          %v471 = vpack.c.b16 %v441, %v439
          %v472 = vpack.c.b16 %v444, %v442
          %v473 = vpack.c.b16 %v445, %v443
          %v474 = vpack.c.b16 %v448, %v446
          %v475 = vpack.c.b16 %v449, %v447
          %v476 = vpack.c.b16 %v452, %v450
          %v477 = vpack.c.b16 %v453, %v451
          %v478 = vpack.c.b16 %v456, %v454
          %v479 = vpack.c.b16 %v457, %v455
          %v480 = vpack.c.b16 %v460, %v458
          %v481 = vpack.c.b16 %v461, %v459
          %v482 = vpack.c.b16 %v464, %v462
          %v483 = vpack.c.b16 %v465, %v463
          %v484 = vpack.c.b16 %v468, %v466
          %v485 = vpack.c.b16 %v469, %v467
          %502 = vmatprep.subr.bf16.mxu0 %v471
          %503 = vmatpush1.bf16.msra.mxu0 %v470
          %504 = vmatprep.subr.bf16.mxu0 %v473
          %505 = vmatpush1.bf16.msra.mxu0 %v472
          %506 = vmatprep.subr.bf16.mxu0 %v475
          %507 = vmatpush1.bf16.msra.mxu0 %v474
          %508 = vmatprep.subr.bf16.mxu0 %v477
          %509 = vmatpush1.bf16.msra.mxu0 %v476
          %510 = vmatprep.subr.bf16.mxu0 %v479
          %511 = vmatpush1.bf16.msra.mxu0 %v478
          %512 = vmatprep.subr.bf16.mxu0 %v481
          %513 = vmatpush1.bf16.msra.mxu0 %v480
          %514 = vmatprep.subr.bf16.mxu0 %v483
          %515 = vmatpush1.bf16.msra.mxu0 %v482
          %516 = vmatprep.subr.bf16.mxu0 %v485
          %517 = vmatpush1.bf16.msra.mxu0 %v484
          %518 = vmatprep.subr.bf16.mxu0 0
          %519 = vmatpush1.bf16.msra.mxu0 0
          %520 = vmatprep.subr.bf16.mxu0 0
          %521 = vmatpush1.bf16.msra.mxu0 0
          %522 = vmatprep.subr.bf16.mxu0 0
          %523 = vmatpush1.bf16.msra.mxu0 0
          %524 = vmatprep.subr.bf16.mxu0 0
          %525 = vmatpush1.bf16.msra.mxu0 0
          %526 = vmatprep.subr.bf16.mxu0 0
          %527 = vmatpush1.bf16.msra.mxu0 0
          %528 = vmatprep.subr.bf16.mxu0 0
          %529 = vmatpush1.bf16.msra.mxu0 0
          %530 = vmatprep.subr.bf16.mxu0 0
          %531 = vmatpush1.bf16.msra.mxu0 0
          %532 = vmatprep.subr.bf16.mxu0 0
          %533 = vmatpush1.bf16.msra.mxu0 0
          %534 = vmatprep.mubr.bf16.mxu0 0
          %535 = vmatmul.mubr.bf16.gmra.mrb[0].mxu0 %v393
          %v536 = vpop.f32.mrb[0].mxu0
          %v537 = vadd.f32 %v415, %v536
          %v538 = vpop.f32.mrb[0].mxu0
          %v539 = vadd.f32 %v419, %v538
          %v540 = vpop.f32.mrb[0].mxu0
          %v541 = vadd.f32 %v415, %v540
          %v542 = vpop.f32.mrb[0].mxu0
          %v543 = vadd.f32 %v419, %v542
          %544 = vdwg.mxu0
          %v545 = vmax.f32 %v537, 0.0
          %v546 = vmax.f32 %v539, 0.0
          %v547 = vmax.f32 %v541, 0.0
          %v548 = vmax.f32 %v543, 0.0
          %v549 = vpack.c.bf16 %v547, %v545
          %v550 = vpack.c.bf16 %v548, %v546
          %v551 = vld [vmem:[#allocation8] sm:$0xff]
          %v552 = vld [vmem:[#allocation8 + $0x8] sm:$0xff]
          %v553 = vld [vmem:[#allocation8 + $0x10] sm:$0xff]
          %v554 = vld [vmem:[#allocation8 + $0x18] sm:$0xff]
          %v555 = vld [vmem:[#allocation8 + $0x20] sm:$0xff]
          %v556 = vld [vmem:[#allocation8 + $0x28] sm:$0xff]
          %v557 = vld [vmem:[#allocation8 + $0x30] sm:$0xff]
          %v558 = vld [vmem:[#allocation8 + $0x38] sm:$0xff]
          %v559 = vld [vmem:[#allocation8 + $0x40] sm:$0xff]
          %v560 = vld [vmem:[#allocation8 + $0x48] sm:$0xff]
          %v561 = vld [vmem:[#allocation8 + $0x50] sm:$0xff]
          %v562 = vld [vmem:[#allocation8 + $0x58] sm:$0xff]
          %v563 = vld [vmem:[#allocation8 + $0x60] sm:$0xff]
          %v564 = vld [vmem:[#allocation8 + $0x68] sm:$0xff]
          %v565 = vld [vmem:[#allocation8 + $0x70] sm:$0xff]
          %v566 = vld [vmem:[#allocation8 + $0x78] sm:$0xff]
          %v567 = vld [vmem:[#allocation8 + $0x80] sm:$0xff]
          %v568 = vld [vmem:[#allocation8 + $0x88] sm:$0xff]
          %v569 = vld [vmem:[#allocation8 + $0x90] sm:$0xff]
          %v570 = vld [vmem:[#allocation8 + $0x98] sm:$0xff]
          %v571 = vld [vmem:[#allocation8 + $0xa0] sm:$0xff]
          %v572 = vld [vmem:[#allocation8 + $0xa8] sm:$0xff]
          %v573 = vld [vmem:[#allocation8 + $0xb0] sm:$0xff]
          %v574 = vld [vmem:[#allocation8 + $0xb8] sm:$0xff]
          %v575 = vld [vmem:[#allocation8 + $0xc0] sm:$0xff]
          %v576 = vld [vmem:[#allocation8 + $0xc8] sm:$0xff]
          %v577 = vld [vmem:[#allocation8 + $0xd0] sm:$0xff]
          %v578 = vld [vmem:[#allocation8 + $0xd8] sm:$0xff]
          %v579 = vld [vmem:[#allocation8 + $0xe0] sm:$0xff]
          %v580 = vld [vmem:[#allocation8 + $0xe8] sm:$0xff]
          %v581 = vld [vmem:[#allocation8 + $0xf0] sm:$0xff]
          %v582 = vld [vmem:[#allocation8 + $0xf8] sm:$0xff]
          %v583 = vld [vmem:[#allocation8 + $0x100] sm:$0xff]
          %v584 = vld [vmem:[#allocation8 + $0x108] sm:$0xff]
          %v585 = vld [vmem:[#allocation8 + $0x110] sm:$0xff]
          %v586 = vld [vmem:[#allocation8 + $0x118] sm:$0xff]
          %v587 = vld [vmem:[#allocation8 + $0x120] sm:$0xff]
          %v588 = vld [vmem:[#allocation8 + $0x128] sm:$0xff]
          %v589 = vld [vmem:[#allocation8 + $0x130] sm:$0xff]
          %v590 = vld [vmem:[#allocation8 + $0x138] sm:$0xff]
          %v591 = vld [vmem:[#allocation8 + $0x140] sm:$0xff]
          %v592 = vld [vmem:[#allocation8 + $0x148] sm:$0xff]
          %v593 = vld [vmem:[#allocation8 + $0x150] sm:$0xff]
          %v594 = vld [vmem:[#allocation8 + $0x158] sm:$0xff]
          %v595 = vld [vmem:[#allocation8 + $0x160] sm:$0xff]
          %v596 = vld [vmem:[#allocation8 + $0x168] sm:$0xff]
          %v597 = vld [vmem:[#allocation8 + $0x170] sm:$0xff]
          %v598 = vld [vmem:[#allocation8 + $0x178] sm:$0xff]
          %v599 = vld [vmem:[#allocation8 + $0x180] sm:$0xff]
          %v600 = vld [vmem:[#allocation8 + $0x188] sm:$0xff]
          %v601 = vld [vmem:[#allocation8 + $0x190] sm:$0xff]
          %v602 = vld [vmem:[#allocation8 + $0x198] sm:$0xff]
          %v603 = vld [vmem:[#allocation8 + $0x1a0] sm:$0xff]
          %v604 = vld [vmem:[#allocation8 + $0x1a8] sm:$0xff]
          %v605 = vld [vmem:[#allocation8 + $0x1b0] sm:$0xff]
          %v606 = vld [vmem:[#allocation8 + $0x1b8] sm:$0xff]
          %v607 = vld [vmem:[#allocation8 + $0x1c0] sm:$0xff]
          %v608 = vld [vmem:[#allocation8 + $0x1c8] sm:$0xff]
          %v609 = vld [vmem:[#allocation8 + $0x1d0] sm:$0xff]
          %v610 = vld [vmem:[#allocation8 + $0x1d8] sm:$0xff]
          %v611 = vld [vmem:[#allocation8 + $0x1e0] sm:$0xff]
          %v612 = vld [vmem:[#allocation8 + $0x1e8] sm:$0xff]
          %v613 = vld [vmem:[#allocation8 + $0x1f0] sm:$0xff]
          %v614 = vld [vmem:[#allocation8 + $0x1f8] sm:$0xff]
          %v615 = vld [vmem:[%s4] sm:$0xf]
          %v617 = vlaneseq
          %v618 = vshrl.u32 %v617, 7
          %v619 = vsub.s32 0, %v618
          %v620 = vrot.slane %v615, %v619
          %v621 = vlaneseq
          %v622 = vshrl.u32 %v621, 7
          %v623 = vsub.s32 1, %v622
          %v624 = vrot.slane %v615, %v623
          %v625 = vlaneseq
          %v626 = vshrl.u32 %v625, 7
          %v627 = vsub.s32 2, %v626
          %v628 = vrot.slane %v615, %v627
          %v629 = vlaneseq
          %v630 = vshrl.u32 %v629, 7
          %v631 = vsub.s32 3, %v630
          %v632 = vrot.slane %v615, %v631
          %v701 = vunpack.c.l.b16 %v551
          %v702 = vunpack.c.h.b16 %v551
          %v703 = vunpack.c.l.b16 %v552
          %v704 = vunpack.c.h.b16 %v552
          %v705 = vunpack.c.l.b16 %v553
          %v706 = vunpack.c.h.b16 %v553
          %v707 = vunpack.c.l.b16 %v554
          %v708 = vunpack.c.h.b16 %v554
          %v709 = vunpack.c.l.b16 %v555
          %v710 = vunpack.c.h.b16 %v555
          %v711 = vunpack.c.l.b16 %v556
          %v712 = vunpack.c.h.b16 %v556
          %v713 = vunpack.c.l.b16 %v557
          %v714 = vunpack.c.h.b16 %v557
          %v715 = vunpack.c.l.b16 %v558
          %v716 = vunpack.c.h.b16 %v558
          %v717 = vunpack.c.l.b16 %v559
          %v718 = vunpack.c.h.b16 %v559
          %v719 = vunpack.c.l.b16 %v560
          %v720 = vunpack.c.h.b16 %v560
          %v721 = vunpack.c.l.b16 %v561
          %v722 = vunpack.c.h.b16 %v561
          %v723 = vunpack.c.l.b16 %v562
          %v724 = vunpack.c.h.b16 %v562
          %v725 = vunpack.c.l.b16 %v563
          %v726 = vunpack.c.h.b16 %v563
          %v727 = vunpack.c.l.b16 %v564
          %v728 = vunpack.c.h.b16 %v564
          %v729 = vunpack.c.l.b16 %v565
          %v730 = vunpack.c.h.b16 %v565
          %v731 = vunpack.c.l.b16 %v566
          %v732 = vunpack.c.h.b16 %v566
          %v733 = vunpack.c.l.b16 %v567
          %v734 = vunpack.c.h.b16 %v567
          %v735 = vunpack.c.l.b16 %v568
          %v736 = vunpack.c.h.b16 %v568
          %v737 = vunpack.c.l.b16 %v569
          %v738 = vunpack.c.h.b16 %v569
          %v739 = vunpack.c.l.b16 %v570
          %v740 = vunpack.c.h.b16 %v570
          %v741 = vunpack.c.l.b16 %v571
          %v742 = vunpack.c.h.b16 %v571
          %v743 = vunpack.c.l.b16 %v572
          %v744 = vunpack.c.h.b16 %v572
          %v745 = vunpack.c.l.b16 %v573
          %v746 = vunpack.c.h.b16 %v573
          %v747 = vunpack.c.l.b16 %v574
          %v748 = vunpack.c.h.b16 %v574
          %v749 = vunpack.c.l.b16 %v575
          %v750 = vunpack.c.h.b16 %v575
          %v751 = vunpack.c.l.b16 %v576
          %v752 = vunpack.c.h.b16 %v576
          %v753 = vunpack.c.l.b16 %v577
          %v754 = vunpack.c.h.b16 %v577
          %v755 = vunpack.c.l.b16 %v578
          %v756 = vunpack.c.h.b16 %v578
          %v757 = vunpack.c.l.b16 %v579
          %v758 = vunpack.c.h.b16 %v579
          %v759 = vunpack.c.l.b16 %v580
          %v760 = vunpack.c.h.b16 %v580
          %v761 = vunpack.c.l.b16 %v581
          %v762 = vunpack.c.h.b16 %v581
          %v763 = vunpack.c.l.b16 %v582
          %v764 = vunpack.c.h.b16 %v582
          %v765 = vunpack.c.l.b16 %v583
          %v766 = vunpack.c.h.b16 %v583
          %v767 = vunpack.c.l.b16 %v584
          %v768 = vunpack.c.h.b16 %v584
          %v769 = vunpack.c.l.b16 %v585
          %v770 = vunpack.c.h.b16 %v585
          %v771 = vunpack.c.l.b16 %v586
          %v772 = vunpack.c.h.b16 %v586
          %v773 = vunpack.c.l.b16 %v587
          %v774 = vunpack.c.h.b16 %v587
          %v775 = vunpack.c.l.b16 %v588
          %v776 = vunpack.c.h.b16 %v588
          %v777 = vunpack.c.l.b16 %v589
          %v778 = vunpack.c.h.b16 %v589
          %v779 = vunpack.c.l.b16 %v590
          %v780 = vunpack.c.h.b16 %v590
          %v781 = vunpack.c.l.b16 %v591
          %v782 = vunpack.c.h.b16 %v591
          %v783 = vunpack.c.l.b16 %v592
          %v784 = vunpack.c.h.b16 %v592
          %v785 = vunpack.c.l.b16 %v593
          %v786 = vunpack.c.h.b16 %v593
          %v787 = vunpack.c.l.b16 %v594
          %v788 = vunpack.c.h.b16 %v594
          %v789 = vunpack.c.l.b16 %v595
          %v790 = vunpack.c.h.b16 %v595
          %v791 = vunpack.c.l.b16 %v596
          %v792 = vunpack.c.h.b16 %v596
          %v793 = vunpack.c.l.b16 %v597
          %v794 = vunpack.c.h.b16 %v597
          %v795 = vunpack.c.l.b16 %v598
          %v796 = vunpack.c.h.b16 %v598
          %v797 = vunpack.c.l.b16 %v599
          %v798 = vunpack.c.h.b16 %v599
          %v799 = vunpack.c.l.b16 %v600
          %v800 = vunpack.c.h.b16 %v600
          %v801 = vunpack.c.l.b16 %v601
          %v802 = vunpack.c.h.b16 %v601
          %v803 = vunpack.c.l.b16 %v602
          %v804 = vunpack.c.h.b16 %v602
          %v805 = vunpack.c.l.b16 %v603
          %v806 = vunpack.c.h.b16 %v603
          %v807 = vunpack.c.l.b16 %v604
          %v808 = vunpack.c.h.b16 %v604
          %v809 = vunpack.c.l.b16 %v605
          %v810 = vunpack.c.h.b16 %v605
          %v811 = vunpack.c.l.b16 %v606
          %v812 = vunpack.c.h.b16 %v606
          %v813 = vunpack.c.l.b16 %v607
          %v814 = vunpack.c.h.b16 %v607
          %v815 = vunpack.c.l.b16 %v608
          %v816 = vunpack.c.h.b16 %v608
          %v817 = vunpack.c.l.b16 %v609
          %v818 = vunpack.c.h.b16 %v609
          %v819 = vunpack.c.l.b16 %v610
          %v820 = vunpack.c.h.b16 %v610
          %v821 = vunpack.c.l.b16 %v611
          %v822 = vunpack.c.h.b16 %v611
          %v823 = vunpack.c.l.b16 %v612
          %v824 = vunpack.c.h.b16 %v612
          %v825 = vunpack.c.l.b16 %v613
          %v826 = vunpack.c.h.b16 %v613
          %v827 = vunpack.c.l.b16 %v614
          %v828 = vunpack.c.h.b16 %v614
          %v829 = vpack.c.b16 %v705, %v701
          %v830 = vpack.c.b16 %v706, %v702
          %v831 = vpack.c.b16 %v707, %v703
          %v832 = vpack.c.b16 %v708, %v704
          %v833 = vpack.c.b16 %v713, %v709
          %v834 = vpack.c.b16 %v714, %v710
          %v835 = vpack.c.b16 %v715, %v711
          %v836 = vpack.c.b16 %v716, %v712
          %v837 = vpack.c.b16 %v721, %v717
          %v838 = vpack.c.b16 %v722, %v718
          %v839 = vpack.c.b16 %v723, %v719
          %v840 = vpack.c.b16 %v724, %v720
          %v841 = vpack.c.b16 %v729, %v725
          %v842 = vpack.c.b16 %v730, %v726
          %v843 = vpack.c.b16 %v731, %v727
          %v844 = vpack.c.b16 %v732, %v728
          %v845 = vpack.c.b16 %v737, %v733
          %v846 = vpack.c.b16 %v738, %v734
          %v847 = vpack.c.b16 %v739, %v735
          %v848 = vpack.c.b16 %v740, %v736
          %v849 = vpack.c.b16 %v745, %v741
          %v850 = vpack.c.b16 %v746, %v742
          %v851 = vpack.c.b16 %v747, %v743
          %v852 = vpack.c.b16 %v748, %v744
          %v853 = vpack.c.b16 %v753, %v749
          %v854 = vpack.c.b16 %v754, %v750
          %v855 = vpack.c.b16 %v755, %v751
          %v856 = vpack.c.b16 %v756, %v752
          %v857 = vpack.c.b16 %v761, %v757
          %v858 = vpack.c.b16 %v762, %v758
          %v859 = vpack.c.b16 %v763, %v759
          %v860 = vpack.c.b16 %v764, %v760
          %v861 = vpack.c.b16 %v769, %v765
          %v862 = vpack.c.b16 %v770, %v766
          %v863 = vpack.c.b16 %v771, %v767
          %v864 = vpack.c.b16 %v772, %v768
          %v865 = vpack.c.b16 %v777, %v773
          %v866 = vpack.c.b16 %v778, %v774
          %v867 = vpack.c.b16 %v779, %v775
          %v868 = vpack.c.b16 %v780, %v776
          %v869 = vpack.c.b16 %v785, %v781
          %v870 = vpack.c.b16 %v786, %v782
          %v871 = vpack.c.b16 %v787, %v783
          %v872 = vpack.c.b16 %v788, %v784
          %v873 = vpack.c.b16 %v793, %v789
          %v874 = vpack.c.b16 %v794, %v790
          %v875 = vpack.c.b16 %v795, %v791
          %v876 = vpack.c.b16 %v796, %v792
          %v877 = vpack.c.b16 %v801, %v797
          %v878 = vpack.c.b16 %v802, %v798
          %v879 = vpack.c.b16 %v803, %v799
          %v880 = vpack.c.b16 %v804, %v800
          %v881 = vpack.c.b16 %v809, %v805
          %v882 = vpack.c.b16 %v810, %v806
          %v883 = vpack.c.b16 %v811, %v807
          %v884 = vpack.c.b16 %v812, %v808
          %v885 = vpack.c.b16 %v817, %v813
          %v886 = vpack.c.b16 %v818, %v814
          %v887 = vpack.c.b16 %v819, %v815
          %v888 = vpack.c.b16 %v820, %v816
          %v889 = vpack.c.b16 %v825, %v821
          %v890 = vpack.c.b16 %v826, %v822
          %v891 = vpack.c.b16 %v827, %v823
          %v892 = vpack.c.b16 %v828, %v824
          %957 = vmatprep.subr.bf16.mxu0 %v830
          %958 = vmatpush1.bf16.msra.mxu0 %v829
          %959 = vmatprep.subr.bf16.mxu0 %v834
          %960 = vmatpush1.bf16.msra.mxu0 %v833
          %961 = vmatprep.subr.bf16.mxu0 %v838
          %962 = vmatpush1.bf16.msra.mxu0 %v837
          %963 = vmatprep.subr.bf16.mxu0 %v842
          %964 = vmatpush1.bf16.msra.mxu0 %v841
          %965 = vmatprep.subr.bf16.mxu0 %v846
          %966 = vmatpush1.bf16.msra.mxu0 %v845
          %967 = vmatprep.subr.bf16.mxu0 %v850
          %968 = vmatpush1.bf16.msra.mxu0 %v849
          %969 = vmatprep.subr.bf16.mxu0 %v854
          %970 = vmatpush1.bf16.msra.mxu0 %v853
          %971 = vmatprep.subr.bf16.mxu0 %v858
          %972 = vmatpush1.bf16.msra.mxu0 %v857
          %973 = vmatprep.subr.bf16.mxu0 %v862
          %974 = vmatpush1.bf16.msra.mxu0 %v861
          %975 = vmatprep.subr.bf16.mxu0 %v866
          %976 = vmatpush1.bf16.msra.mxu0 %v865
          %977 = vmatprep.subr.bf16.mxu0 %v870
          %978 = vmatpush1.bf16.msra.mxu0 %v869
          %979 = vmatprep.subr.bf16.mxu0 %v874
          %980 = vmatpush1.bf16.msra.mxu0 %v873
          %981 = vmatprep.subr.bf16.mxu0 %v878
          %982 = vmatpush1.bf16.msra.mxu0 %v877
          %983 = vmatprep.subr.bf16.mxu0 %v882
          %984 = vmatpush1.bf16.msra.mxu0 %v881
          %985 = vmatprep.subr.bf16.mxu0 %v886
          %986 = vmatpush1.bf16.msra.mxu0 %v885
          %987 = vmatprep.subr.bf16.mxu0 %v890
          %988 = vmatpush1.bf16.msra.mxu0 %v889
          %989 = vmatprep.mubr.bf16.mxu0 %v550
          %990 = vmatmul.mubr.bf16.gmra.mrb[0].mxu0 %v549
          %v991 = vpop.f32.mrb[0].mxu0
          %v992 = vadd.f32 %v620, %v991
          %v993 = vpop.f32.mrb[0].mxu0
          %v994 = vadd.f32 %v624, %v993
          %v995 = vpop.f32.mrb[0].mxu0
          %v996 = vadd.f32 %v620, %v995
          %v997 = vpop.f32.mrb[0].mxu0
          %v998 = vadd.f32 %v624, %v997
          %999 = vdwg.mxu0
          %1000 = vmatprep.subr.bf16.mxu0 %v832
          %1001 = vmatpush1.bf16.msra.mxu0 %v831
          %1002 = vmatprep.subr.bf16.mxu0 %v836
          %1003 = vmatpush1.bf16.msra.mxu0 %v835
          %1004 = vmatprep.subr.bf16.mxu0 %v840
          %1005 = vmatpush1.bf16.msra.mxu0 %v839
          %1006 = vmatprep.subr.bf16.mxu0 %v844
          %1007 = vmatpush1.bf16.msra.mxu0 %v843
          %1008 = vmatprep.subr.bf16.mxu0 %v848
          %1009 = vmatpush1.bf16.msra.mxu0 %v847
          %1010 = vmatprep.subr.bf16.mxu0 %v852
          %1011 = vmatpush1.bf16.msra.mxu0 %v851
          %1012 = vmatprep.subr.bf16.mxu0 %v856
          %1013 = vmatpush1.bf16.msra.mxu0 %v855
          %1014 = vmatprep.subr.bf16.mxu0 %v860
          %1015 = vmatpush1.bf16.msra.mxu0 %v859
          %1016 = vmatprep.subr.bf16.mxu0 %v864
          %1017 = vmatpush1.bf16.msra.mxu0 %v863
          %1018 = vmatprep.subr.bf16.mxu0 %v868
          %1019 = vmatpush1.bf16.msra.mxu0 %v867
          %1020 = vmatprep.subr.bf16.mxu0 %v872
          %1021 = vmatpush1.bf16.msra.mxu0 %v871
          %1022 = vmatprep.subr.bf16.mxu0 %v876
          %1023 = vmatpush1.bf16.msra.mxu0 %v875
          %1024 = vmatprep.subr.bf16.mxu0 %v880
          %1025 = vmatpush1.bf16.msra.mxu0 %v879
          %1026 = vmatprep.subr.bf16.mxu0 %v884
          %1027 = vmatpush1.bf16.msra.mxu0 %v883
          %1028 = vmatprep.subr.bf16.mxu0 %v888
          %1029 = vmatpush1.bf16.msra.mxu0 %v887
          %1030 = vmatprep.subr.bf16.mxu0 %v892
          %1031 = vmatpush1.bf16.msra.mxu0 %v891
          %1032 = vmatprep.mubr.bf16.mxu0 %v550
          %1033 = vmatmul.mubr.bf16.gmra.mrb[0].mxu0 %v549
          %v1034 = vpop.f32.mrb[0].mxu0
          %v1035 = vadd.f32 %v628, %v1034
          %v1036 = vpop.f32.mrb[0].mxu0
          %v1037 = vadd.f32 %v632, %v1036
          %v1038 = vpop.f32.mrb[0].mxu0
          %v1039 = vadd.f32 %v628, %v1038
          %v1040 = vpop.f32.mrb[0].mxu0
          %v1041 = vadd.f32 %v632, %v1040
          %1042 = vdwg.mxu0
          %v1043 = vmax.f32 %v992, 0.0
          %v1044 = vmax.f32 %v994, 0.0
          %v1045 = vmax.f32 %v1035, 0.0
          %v1046 = vmax.f32 %v1037, 0.0
          %v1047 = vmax.f32 %v996, 0.0
          %v1048 = vmax.f32 %v998, 0.0
          %v1049 = vmax.f32 %v1039, 0.0
          %v1050 = vmax.f32 %v1041, 0.0
          %v1051 = vpack.c.bf16 %v1047, %v1043
          %v1052 = vpack.c.bf16 %v1048, %v1044
          %v1053 = vpack.c.bf16 %v1049, %v1045
          %v1054 = vpack.c.bf16 %v1050, %v1046
          %1055 = vst [vmem:[#allocation2] sm:$0xff] %v1051
          %1056 = vst [vmem:[#allocation2 + $0x8] sm:$0xff] %v1052
          %1057 = vst [vmem:[#allocation2 + $0x10] sm:$0xff] %v1053
          %1058 = vst [vmem:[#allocation2 + $0x18] sm:$0xff] %v1054
        $region68: #{tpu_custom_call.1} parent=47 // pred_fallthru
          _
        %v1059 = vld [vmem:[#allocation2] sm:$0xff]
        %v1060 = vld [vmem:[#allocation2 + $0x8] sm:$0xff]
        %v1061 = vld [vmem:[#allocation2 + $0x10] sm:$0xff]
        %v1062 = vld [vmem:[#allocation2 + $0x18] sm:$0xff]
        %v1063 = vld [vmem:[%s342] sm:$0xff]
        %v1064 = vld [vmem:[%s342 + $0x8] sm:$0xff]
        %v1065 = vld [vmem:[%s342 + $0x10] sm:$0xff]
        %v1066 = vld [vmem:[%s342 + $0x18] sm:$0xff]
        %v1067 = vld [vmem:[%s342 + $0x20] sm:$0xff]
        %v1068 = vld [vmem:[%s342 + $0x28] sm:$0xff]
        %v1069 = vld [vmem:[%s342 + $0x30] sm:$0xff]
        %v1070 = vld [vmem:[%s342 + $0x38] sm:$0xff]
        %v1071 = vld [vmem:[%s342 + $0x40] sm:$0xff]
        %v1072 = vld [vmem:[%s342 + $0x48] sm:$0xff]
        %v1073 = vld [vmem:[%s342 + $0x50] sm:$0xff]
        %v1074 = vld [vmem:[%s342 + $0x58] sm:$0xff]
        %v1075 = vld [vmem:[%s342 + $0x60] sm:$0xff]
        %v1076 = vld [vmem:[%s342 + $0x68] sm:$0xff]
        %v1077 = vld [vmem:[%s342 + $0x70] sm:$0xff]
        %v1078 = vld [vmem:[%s342 + $0x78] sm:$0xff]
        %v1079 = vld [vmem:[%s342 + $0x80] sm:$0xff]
        %v1080 = vld [vmem:[%s342 + $0x88] sm:$0xff]
        %v1081 = vld [vmem:[%s342 + $0x90] sm:$0xff]
        %v1082 = vld [vmem:[%s342 + $0x98] sm:$0xff]
        %v1083 = vld [vmem:[%s342 + $0xa0] sm:$0xff]
        %v1084 = vld [vmem:[%s342 + $0xa8] sm:$0xff]
        %v1085 = vld [vmem:[%s342 + $0xb0] sm:$0xff]
        %v1086 = vld [vmem:[%s342 + $0xb8] sm:$0xff]
        %v1087 = vld [vmem:[%s342 + $0xc0] sm:$0xff]
        %v1088 = vld [vmem:[%s342 + $0xc8] sm:$0xff]
        %v1089 = vld [vmem:[%s342 + $0xd0] sm:$0xff]
        %v1090 = vld [vmem:[%s342 + $0xd8] sm:$0xff]
        %v1091 = vld [vmem:[%s342 + $0xe0] sm:$0xff]
        %v1092 = vld [vmem:[%s342 + $0xe8] sm:$0xff]
        %v1093 = vld [vmem:[%s342 + $0xf0] sm:$0xff]
        %v1094 = vld [vmem:[%s342 + $0xf8] sm:$0xff]
        %v1095 = vld [vmem:[%s342 + $0x100] sm:$0xff]
        %v1096 = vld [vmem:[%s342 + $0x108] sm:$0xff]
        %v1097 = vld [vmem:[%s342 + $0x110] sm:$0xff]
        %v1098 = vld [vmem:[%s342 + $0x118] sm:$0xff]
        %v1099 = vld [vmem:[%s342 + $0x120] sm:$0xff]
        %v1100 = vld [vmem:[%s342 + $0x128] sm:$0xff]
        %v1101 = vld [vmem:[%s342 + $0x130] sm:$0xff]
        %v1102 = vld [vmem:[%s342 + $0x138] sm:$0xff]
        %v1103 = vld [vmem:[%s342 + $0x140] sm:$0xff]
        %v1104 = vld [vmem:[%s342 + $0x148] sm:$0xff]
        %v1105 = vld [vmem:[%s342 + $0x150] sm:$0xff]
        %v1106 = vld [vmem:[%s342 + $0x158] sm:$0xff]
        %v1107 = vld [vmem:[%s342 + $0x160] sm:$0xff]
        %v1108 = vld [vmem:[%s342 + $0x168] sm:$0xff]
        %v1109 = vld [vmem:[%s342 + $0x170] sm:$0xff]
        %v1110 = vld [vmem:[%s342 + $0x178] sm:$0xff]
        %v1111 = vld [vmem:[%s342 + $0x180] sm:$0xff]
        %v1112 = vld [vmem:[%s342 + $0x188] sm:$0xff]
        %v1113 = vld [vmem:[%s342 + $0x190] sm:$0xff]
        %v1114 = vld [vmem:[%s342 + $0x198] sm:$0xff]
        %v1115 = vld [vmem:[%s342 + $0x1a0] sm:$0xff]
        %v1116 = vld [vmem:[%s342 + $0x1a8] sm:$0xff]
        %v1117 = vld [vmem:[%s342 + $0x1b0] sm:$0xff]
        %v1118 = vld [vmem:[%s342 + $0x1b8] sm:$0xff]
        %v1119 = vld [vmem:[%s342 + $0x1c0] sm:$0xff]
        %v1120 = vld [vmem:[%s342 + $0x1c8] sm:$0xff]
        %v1121 = vld [vmem:[%s342 + $0x1d0] sm:$0xff]
        %v1122 = vld [vmem:[%s342 + $0x1d8] sm:$0xff]
        %v1123 = vld [vmem:[%s342 + $0x1e0] sm:$0xff]
        %v1124 = vld [vmem:[%s342 + $0x1e8] sm:$0xff]
        %v1125 = vld [vmem:[%s342 + $0x1f0] sm:$0xff]
        %v1126 = vld [vmem:[%s342 + $0x1f8] sm:$0xff]
        %v1127 = vld [vmem:[%s342 + $0x200] sm:$0xff]
        %v1128 = vld [vmem:[%s342 + $0x208] sm:$0xff]
        %v1129 = vld [vmem:[%s342 + $0x210] sm:$0xff]
        %v1130 = vld [vmem:[%s342 + $0x218] sm:$0xff]
        %v1131 = vld [vmem:[%s342 + $0x220] sm:$0xff]
        %v1132 = vld [vmem:[%s342 + $0x228] sm:$0xff]
        %v1133 = vld [vmem:[%s342 + $0x230] sm:$0xff]
        %v1134 = vld [vmem:[%s342 + $0x238] sm:$0xff]
        %v1135 = vld [vmem:[%s342 + $0x240] sm:$0xff]
        %v1136 = vld [vmem:[%s342 + $0x248] sm:$0xff]
        %v1137 = vld [vmem:[%s342 + $0x250] sm:$0xff]
        %v1138 = vld [vmem:[%s342 + $0x258] sm:$0xff]
        %v1139 = vld [vmem:[%s342 + $0x260] sm:$0xff]
        %v1140 = vld [vmem:[%s342 + $0x268] sm:$0xff]
        %v1141 = vld [vmem:[%s342 + $0x270] sm:$0xff]
        %v1142 = vld [vmem:[%s342 + $0x278] sm:$0xff]
        %v1143 = vld [vmem:[%s342 + $0x280] sm:$0xff]
        %v1144 = vld [vmem:[%s342 + $0x288] sm:$0xff]
        %v1145 = vld [vmem:[%s342 + $0x290] sm:$0xff]
        %v1146 = vld [vmem:[%s342 + $0x298] sm:$0xff]
        %v1147 = vld [vmem:[%s342 + $0x2a0] sm:$0xff]
        %v1148 = vld [vmem:[%s342 + $0x2a8] sm:$0xff]
        %v1149 = vld [vmem:[%s342 + $0x2b0] sm:$0xff]
        %v1150 = vld [vmem:[%s342 + $0x2b8] sm:$0xff]
        %v1151 = vld [vmem:[%s342 + $0x2c0] sm:$0xff]
        %v1152 = vld [vmem:[%s342 + $0x2c8] sm:$0xff]
        %v1153 = vld [vmem:[%s342 + $0x2d0] sm:$0xff]
        %v1154 = vld [vmem:[%s342 + $0x2d8] sm:$0xff]
        %v1155 = vld [vmem:[%s342 + $0x2e0] sm:$0xff]
        %v1156 = vld [vmem:[%s342 + $0x2e8] sm:$0xff]
        %v1157 = vld [vmem:[%s342 + $0x2f0] sm:$0xff]
        %v1158 = vld [vmem:[%s342 + $0x2f8] sm:$0xff]
        %v1159 = vld [vmem:[%s342 + $0x300] sm:$0xff]
        %v1160 = vld [vmem:[%s342 + $0x308] sm:$0xff]
        %v1161 = vld [vmem:[%s342 + $0x310] sm:$0xff]
        %v1162 = vld [vmem:[%s342 + $0x318] sm:$0xff]
        %v1163 = vld [vmem:[%s342 + $0x320] sm:$0xff]
        %v1164 = vld [vmem:[%s342 + $0x328] sm:$0xff]
        %v1165 = vld [vmem:[%s342 + $0x330] sm:$0xff]
        %v1166 = vld [vmem:[%s342 + $0x338] sm:$0xff]
        %v1167 = vld [vmem:[%s342 + $0x340] sm:$0xff]
        %v1168 = vld [vmem:[%s342 + $0x348] sm:$0xff]
        %v1169 = vld [vmem:[%s342 + $0x350] sm:$0xff]
        %v1170 = vld [vmem:[%s342 + $0x358] sm:$0xff]
        %v1171 = vld [vmem:[%s342 + $0x360] sm:$0xff]
        %v1172 = vld [vmem:[%s342 + $0x368] sm:$0xff]
        %v1173 = vld [vmem:[%s342 + $0x370] sm:$0xff]
        %v1174 = vld [vmem:[%s342 + $0x378] sm:$0xff]
        %v1175 = vld [vmem:[%s342 + $0x380] sm:$0xff]
        %v1176 = vld [vmem:[%s342 + $0x388] sm:$0xff]
        %v1177 = vld [vmem:[%s342 + $0x390] sm:$0xff]
        %v1178 = vld [vmem:[%s342 + $0x398] sm:$0xff]
        %v1179 = vld [vmem:[%s342 + $0x3a0] sm:$0xff]
        %v1180 = vld [vmem:[%s342 + $0x3a8] sm:$0xff]
        %v1181 = vld [vmem:[%s342 + $0x3b0] sm:$0xff]
        %v1182 = vld [vmem:[%s342 + $0x3b8] sm:$0xff]
        %v1183 = vld [vmem:[%s342 + $0x3c0] sm:$0xff]
        %v1184 = vld [vmem:[%s342 + $0x3c8] sm:$0xff]
        %v1185 = vld [vmem:[%s342 + $0x3d0] sm:$0xff]
        %v1186 = vld [vmem:[%s342 + $0x3d8] sm:$0xff]
        %v1187 = vld [vmem:[%s342 + $0x3e0] sm:$0xff]
        %v1188 = vld [vmem:[%s342 + $0x3e8] sm:$0xff]
        %v1189 = vld [vmem:[%s342 + $0x3f0] sm:$0xff]
        %v1190 = vld [vmem:[%s342 + $0x3f8] sm:$0xff]
        %v1191 = vld [vmem:[%s382] sm:$0xf]
        %v1193 = vlaneseq
        %v1194 = vshrl.u32 %v1193, 7
        %v1195 = vsub.s32 0, %v1194
        %v1196 = vrot.slane %v1191, %v1195
        %v1197 = vlaneseq
        %v1198 = vshrl.u32 %v1197, 7
        %v1199 = vsub.s32 1, %v1198
        %v1200 = vrot.slane %v1191, %v1199
        %v1201 = vlaneseq
        %v1202 = vshrl.u32 %v1201, 7
        %v1203 = vsub.s32 2, %v1202
        %v1204 = vrot.slane %v1191, %v1203
        %v1205 = vlaneseq
        %v1206 = vshrl.u32 %v1205, 7
        %v1207 = vsub.s32 3, %v1206
        %v1208 = vrot.slane %v1191, %v1207
        %v1341 = vunpack.c.l.b16 %v1063
        %v1342 = vunpack.c.h.b16 %v1063
        %v1343 = vunpack.c.l.b16 %v1064
        %v1344 = vunpack.c.h.b16 %v1064
        %v1345 = vunpack.c.l.b16 %v1065
        %v1346 = vunpack.c.h.b16 %v1065
        %v1347 = vunpack.c.l.b16 %v1066
        %v1348 = vunpack.c.h.b16 %v1066
        %v1349 = vunpack.c.l.b16 %v1067
        %v1350 = vunpack.c.h.b16 %v1067
        %v1351 = vunpack.c.l.b16 %v1068
        %v1352 = vunpack.c.h.b16 %v1068
        %v1353 = vunpack.c.l.b16 %v1069
        %v1354 = vunpack.c.h.b16 %v1069
        %v1355 = vunpack.c.l.b16 %v1070
        %v1356 = vunpack.c.h.b16 %v1070
        %v1357 = vunpack.c.l.b16 %v1071
        %v1358 = vunpack.c.h.b16 %v1071
        %v1359 = vunpack.c.l.b16 %v1072
        %v1360 = vunpack.c.h.b16 %v1072
        %v1361 = vunpack.c.l.b16 %v1073
        %v1362 = vunpack.c.h.b16 %v1073
        %v1363 = vunpack.c.l.b16 %v1074
        %v1364 = vunpack.c.h.b16 %v1074
        %v1365 = vunpack.c.l.b16 %v1075
        %v1366 = vunpack.c.h.b16 %v1075
        %v1367 = vunpack.c.l.b16 %v1076
        %v1368 = vunpack.c.h.b16 %v1076
        %v1369 = vunpack.c.l.b16 %v1077
        %v1370 = vunpack.c.h.b16 %v1077
        %v1371 = vunpack.c.l.b16 %v1078
        %v1372 = vunpack.c.h.b16 %v1078
        %v1373 = vunpack.c.l.b16 %v1079
        %v1374 = vunpack.c.h.b16 %v1079
        %v1375 = vunpack.c.l.b16 %v1080
        %v1376 = vunpack.c.h.b16 %v1080
        %v1377 = vunpack.c.l.b16 %v1081
        %v1378 = vunpack.c.h.b16 %v1081
        %v1379 = vunpack.c.l.b16 %v1082
        %v1380 = vunpack.c.h.b16 %v1082
        %v1381 = vunpack.c.l.b16 %v1083
        %v1382 = vunpack.c.h.b16 %v1083
        %v1383 = vunpack.c.l.b16 %v1084
        %v1384 = vunpack.c.h.b16 %v1084
        %v1385 = vunpack.c.l.b16 %v1085
        %v1386 = vunpack.c.h.b16 %v1085
        %v1387 = vunpack.c.l.b16 %v1086
        %v1388 = vunpack.c.h.b16 %v1086
        %v1389 = vunpack.c.l.b16 %v1087
        %v1390 = vunpack.c.h.b16 %v1087
        %v1391 = vunpack.c.l.b16 %v1088
        %v1392 = vunpack.c.h.b16 %v1088
        %v1393 = vunpack.c.l.b16 %v1089
        %v1394 = vunpack.c.h.b16 %v1089
        %v1395 = vunpack.c.l.b16 %v1090
        %v1396 = vunpack.c.h.b16 %v1090
        %v1397 = vunpack.c.l.b16 %v1091
        %v1398 = vunpack.c.h.b16 %v1091
        %v1399 = vunpack.c.l.b16 %v1092
        %v1400 = vunpack.c.h.b16 %v1092
        %v1401 = vunpack.c.l.b16 %v1093
        %v1402 = vunpack.c.h.b16 %v1093
        %v1403 = vunpack.c.l.b16 %v1094
        %v1404 = vunpack.c.h.b16 %v1094
        %v1405 = vunpack.c.l.b16 %v1095
        %v1406 = vunpack.c.h.b16 %v1095
        %v1407 = vunpack.c.l.b16 %v1096
        %v1408 = vunpack.c.h.b16 %v1096
        %v1409 = vunpack.c.l.b16 %v1097
        %v1410 = vunpack.c.h.b16 %v1097
        %v1411 = vunpack.c.l.b16 %v1098
        %v1412 = vunpack.c.h.b16 %v1098
        %v1413 = vunpack.c.l.b16 %v1099
        %v1414 = vunpack.c.h.b16 %v1099
        %v1415 = vunpack.c.l.b16 %v1100
        %v1416 = vunpack.c.h.b16 %v1100
        %v1417 = vunpack.c.l.b16 %v1101
        %v1418 = vunpack.c.h.b16 %v1101
        %v1419 = vunpack.c.l.b16 %v1102
        %v1420 = vunpack.c.h.b16 %v1102
        %v1421 = vunpack.c.l.b16 %v1103
        %v1422 = vunpack.c.h.b16 %v1103
        %v1423 = vunpack.c.l.b16 %v1104
        %v1424 = vunpack.c.h.b16 %v1104
        %v1425 = vunpack.c.l.b16 %v1105
        %v1426 = vunpack.c.h.b16 %v1105
        %v1427 = vunpack.c.l.b16 %v1106
        %v1428 = vunpack.c.h.b16 %v1106
        %v1429 = vunpack.c.l.b16 %v1107
        %v1430 = vunpack.c.h.b16 %v1107
        %v1431 = vunpack.c.l.b16 %v1108
        %v1432 = vunpack.c.h.b16 %v1108
        %v1433 = vunpack.c.l.b16 %v1109
        %v1434 = vunpack.c.h.b16 %v1109
        %v1435 = vunpack.c.l.b16 %v1110
        %v1436 = vunpack.c.h.b16 %v1110
        %v1437 = vunpack.c.l.b16 %v1111
        %v1438 = vunpack.c.h.b16 %v1111
        %v1439 = vunpack.c.l.b16 %v1112
        %v1440 = vunpack.c.h.b16 %v1112
        %v1441 = vunpack.c.l.b16 %v1113
        %v1442 = vunpack.c.h.b16 %v1113
        %v1443 = vunpack.c.l.b16 %v1114
        %v1444 = vunpack.c.h.b16 %v1114
        %v1445 = vunpack.c.l.b16 %v1115
        %v1446 = vunpack.c.h.b16 %v1115
        %v1447 = vunpack.c.l.b16 %v1116
        %v1448 = vunpack.c.h.b16 %v1116
        %v1449 = vunpack.c.l.b16 %v1117
        %v1450 = vunpack.c.h.b16 %v1117
        %v1451 = vunpack.c.l.b16 %v1118
        %v1452 = vunpack.c.h.b16 %v1118
        %v1453 = vunpack.c.l.b16 %v1119
        %v1454 = vunpack.c.h.b16 %v1119
        %v1455 = vunpack.c.l.b16 %v1120
        %v1456 = vunpack.c.h.b16 %v1120
        %v1457 = vunpack.c.l.b16 %v1121
        %v1458 = vunpack.c.h.b16 %v1121
        %v1459 = vunpack.c.l.b16 %v1122
        %v1460 = vunpack.c.h.b16 %v1122
        %v1461 = vunpack.c.l.b16 %v1123
        %v1462 = vunpack.c.h.b16 %v1123
        %v1463 = vunpack.c.l.b16 %v1124
        %v1464 = vunpack.c.h.b16 %v1124
        %v1465 = vunpack.c.l.b16 %v1125
        %v1466 = vunpack.c.h.b16 %v1125
        %v1467 = vunpack.c.l.b16 %v1126
        %v1468 = vunpack.c.h.b16 %v1126
        %v1469 = vunpack.c.l.b16 %v1127
        %v1470 = vunpack.c.h.b16 %v1127
        %v1471 = vunpack.c.l.b16 %v1128
        %v1472 = vunpack.c.h.b16 %v1128
        %v1473 = vunpack.c.l.b16 %v1129
        %v1474 = vunpack.c.h.b16 %v1129
        %v1475 = vunpack.c.l.b16 %v1130
        %v1476 = vunpack.c.h.b16 %v1130
        %v1477 = vunpack.c.l.b16 %v1131
        %v1478 = vunpack.c.h.b16 %v1131
        %v1479 = vunpack.c.l.b16 %v1132
        %v1480 = vunpack.c.h.b16 %v1132
        %v1481 = vunpack.c.l.b16 %v1133
        %v1482 = vunpack.c.h.b16 %v1133
        %v1483 = vunpack.c.l.b16 %v1134
        %v1484 = vunpack.c.h.b16 %v1134
        %v1485 = vunpack.c.l.b16 %v1135
        %v1486 = vunpack.c.h.b16 %v1135
        %v1487 = vunpack.c.l.b16 %v1136
        %v1488 = vunpack.c.h.b16 %v1136
        %v1489 = vunpack.c.l.b16 %v1137
        %v1490 = vunpack.c.h.b16 %v1137
        %v1491 = vunpack.c.l.b16 %v1138
        %v1492 = vunpack.c.h.b16 %v1138
        %v1493 = vunpack.c.l.b16 %v1139
        %v1494 = vunpack.c.h.b16 %v1139
        %v1495 = vunpack.c.l.b16 %v1140
        %v1496 = vunpack.c.h.b16 %v1140
        %v1497 = vunpack.c.l.b16 %v1141
        %v1498 = vunpack.c.h.b16 %v1141
        %v1499 = vunpack.c.l.b16 %v1142
        %v1500 = vunpack.c.h.b16 %v1142
        %v1501 = vunpack.c.l.b16 %v1143
        %v1502 = vunpack.c.h.b16 %v1143
        %v1503 = vunpack.c.l.b16 %v1144
        %v1504 = vunpack.c.h.b16 %v1144
        %v1505 = vunpack.c.l.b16 %v1145
        %v1506 = vunpack.c.h.b16 %v1145
        %v1507 = vunpack.c.l.b16 %v1146
        %v1508 = vunpack.c.h.b16 %v1146
        %v1509 = vunpack.c.l.b16 %v1147
        %v1510 = vunpack.c.h.b16 %v1147
        %v1511 = vunpack.c.l.b16 %v1148
        %v1512 = vunpack.c.h.b16 %v1148
        %v1513 = vunpack.c.l.b16 %v1149
        %v1514 = vunpack.c.h.b16 %v1149
        %v1515 = vunpack.c.l.b16 %v1150
        %v1516 = vunpack.c.h.b16 %v1150
        %v1517 = vunpack.c.l.b16 %v1151
        %v1518 = vunpack.c.h.b16 %v1151
        %v1519 = vunpack.c.l.b16 %v1152
        %v1520 = vunpack.c.h.b16 %v1152
        %v1521 = vunpack.c.l.b16 %v1153
        %v1522 = vunpack.c.h.b16 %v1153
        %v1523 = vunpack.c.l.b16 %v1154
        %v1524 = vunpack.c.h.b16 %v1154
        %v1525 = vunpack.c.l.b16 %v1155
        %v1526 = vunpack.c.h.b16 %v1155
        %v1527 = vunpack.c.l.b16 %v1156
        %v1528 = vunpack.c.h.b16 %v1156
        %v1529 = vunpack.c.l.b16 %v1157
        %v1530 = vunpack.c.h.b16 %v1157
        %v1531 = vunpack.c.l.b16 %v1158
        %v1532 = vunpack.c.h.b16 %v1158
        %v1533 = vunpack.c.l.b16 %v1159
        %v1534 = vunpack.c.h.b16 %v1159
        %v1535 = vunpack.c.l.b16 %v1160
        %v1536 = vunpack.c.h.b16 %v1160
        %v1537 = vunpack.c.l.b16 %v1161
        %v1538 = vunpack.c.h.b16 %v1161
        %v1539 = vunpack.c.l.b16 %v1162
        %v1540 = vunpack.c.h.b16 %v1162
        %v1541 = vunpack.c.l.b16 %v1163
        %v1542 = vunpack.c.h.b16 %v1163
        %v1543 = vunpack.c.l.b16 %v1164
        %v1544 = vunpack.c.h.b16 %v1164
        %v1545 = vunpack.c.l.b16 %v1165
        %v1546 = vunpack.c.h.b16 %v1165
        %v1547 = vunpack.c.l.b16 %v1166
        %v1548 = vunpack.c.h.b16 %v1166
        %v1549 = vunpack.c.l.b16 %v1167
        %v1550 = vunpack.c.h.b16 %v1167
        %v1551 = vunpack.c.l.b16 %v1168
        %v1552 = vunpack.c.h.b16 %v1168
        %v1553 = vunpack.c.l.b16 %v1169
        %v1554 = vunpack.c.h.b16 %v1169
        %v1555 = vunpack.c.l.b16 %v1170
        %v1556 = vunpack.c.h.b16 %v1170
        %v1557 = vunpack.c.l.b16 %v1171
        %v1558 = vunpack.c.h.b16 %v1171
        %v1559 = vunpack.c.l.b16 %v1172
        %v1560 = vunpack.c.h.b16 %v1172
        %v1561 = vunpack.c.l.b16 %v1173
        %v1562 = vunpack.c.h.b16 %v1173
        %v1563 = vunpack.c.l.b16 %v1174
        %v1564 = vunpack.c.h.b16 %v1174
        %v1565 = vunpack.c.l.b16 %v1175
        %v1566 = vunpack.c.h.b16 %v1175
        %v1567 = vunpack.c.l.b16 %v1176
        %v1568 = vunpack.c.h.b16 %v1176
        %v1569 = vunpack.c.l.b16 %v1177
        %v1570 = vunpack.c.h.b16 %v1177
        %v1571 = vunpack.c.l.b16 %v1178
        %v1572 = vunpack.c.h.b16 %v1178
        %v1573 = vunpack.c.l.b16 %v1179
        %v1574 = vunpack.c.h.b16 %v1179
        %v1575 = vunpack.c.l.b16 %v1180
        %v1576 = vunpack.c.h.b16 %v1180
        %v1577 = vunpack.c.l.b16 %v1181
        %v1578 = vunpack.c.h.b16 %v1181
        %v1579 = vunpack.c.l.b16 %v1182
        %v1580 = vunpack.c.h.b16 %v1182
        %v1581 = vunpack.c.l.b16 %v1183
        %v1582 = vunpack.c.h.b16 %v1183
        %v1583 = vunpack.c.l.b16 %v1184
        %v1584 = vunpack.c.h.b16 %v1184
        %v1585 = vunpack.c.l.b16 %v1185
        %v1586 = vunpack.c.h.b16 %v1185
        %v1587 = vunpack.c.l.b16 %v1186
        %v1588 = vunpack.c.h.b16 %v1186
        %v1589 = vunpack.c.l.b16 %v1187
        %v1590 = vunpack.c.h.b16 %v1187
        %v1591 = vunpack.c.l.b16 %v1188
        %v1592 = vunpack.c.h.b16 %v1188
        %v1593 = vunpack.c.l.b16 %v1189
        %v1594 = vunpack.c.h.b16 %v1189
        %v1595 = vunpack.c.l.b16 %v1190
        %v1596 = vunpack.c.h.b16 %v1190
        %v1597 = vpack.c.b16 %v1345, %v1341
        %v1598 = vpack.c.b16 %v1346, %v1342
        %v1599 = vpack.c.b16 %v1347, %v1343
        %v1600 = vpack.c.b16 %v1348, %v1344
        %v1601 = vpack.c.b16 %v1353, %v1349
        %v1602 = vpack.c.b16 %v1354, %v1350
        %v1603 = vpack.c.b16 %v1355, %v1351
        %v1604 = vpack.c.b16 %v1356, %v1352
        %v1605 = vpack.c.b16 %v1361, %v1357
        %v1606 = vpack.c.b16 %v1362, %v1358
        %v1607 = vpack.c.b16 %v1363, %v1359
        %v1608 = vpack.c.b16 %v1364, %v1360
        %v1609 = vpack.c.b16 %v1369, %v1365
        %v1610 = vpack.c.b16 %v1370, %v1366
        %v1611 = vpack.c.b16 %v1371, %v1367
        %v1612 = vpack.c.b16 %v1372, %v1368
        %v1613 = vpack.c.b16 %v1377, %v1373
        %v1614 = vpack.c.b16 %v1378, %v1374
        %v1615 = vpack.c.b16 %v1379, %v1375
        %v1616 = vpack.c.b16 %v1380, %v1376
        %v1617 = vpack.c.b16 %v1385, %v1381
        %v1618 = vpack.c.b16 %v1386, %v1382
        %v1619 = vpack.c.b16 %v1387, %v1383
        %v1620 = vpack.c.b16 %v1388, %v1384
        %v1621 = vpack.c.b16 %v1393, %v1389
        %v1622 = vpack.c.b16 %v1394, %v1390
        %v1623 = vpack.c.b16 %v1395, %v1391
        %v1624 = vpack.c.b16 %v1396, %v1392
        %v1625 = vpack.c.b16 %v1401, %v1397
        %v1626 = vpack.c.b16 %v1402, %v1398
        %v1627 = vpack.c.b16 %v1403, %v1399
        %v1628 = vpack.c.b16 %v1404, %v1400
        %v1629 = vpack.c.b16 %v1409, %v1405
        %v1630 = vpack.c.b16 %v1410, %v1406
        %v1631 = vpack.c.b16 %v1411, %v1407
        %v1632 = vpack.c.b16 %v1412, %v1408
        %v1633 = vpack.c.b16 %v1417, %v1413
        %v1634 = vpack.c.b16 %v1418, %v1414
        %v1635 = vpack.c.b16 %v1419, %v1415
        %v1636 = vpack.c.b16 %v1420, %v1416
        %v1637 = vpack.c.b16 %v1425, %v1421
        %v1638 = vpack.c.b16 %v1426, %v1422
        %v1639 = vpack.c.b16 %v1427, %v1423
        %v1640 = vpack.c.b16 %v1428, %v1424
        %v1641 = vpack.c.b16 %v1433, %v1429
        %v1642 = vpack.c.b16 %v1434, %v1430
        %v1643 = vpack.c.b16 %v1435, %v1431
        %v1644 = vpack.c.b16 %v1436, %v1432
        %v1645 = vpack.c.b16 %v1441, %v1437
        %v1646 = vpack.c.b16 %v1442, %v1438
        %v1647 = vpack.c.b16 %v1443, %v1439
        %v1648 = vpack.c.b16 %v1444, %v1440
        %v1649 = vpack.c.b16 %v1449, %v1445
        %v1650 = vpack.c.b16 %v1450, %v1446
        %v1651 = vpack.c.b16 %v1451, %v1447
        %v1652 = vpack.c.b16 %v1452, %v1448
        %v1653 = vpack.c.b16 %v1457, %v1453
        %v1654 = vpack.c.b16 %v1458, %v1454
        %v1655 = vpack.c.b16 %v1459, %v1455
        %v1656 = vpack.c.b16 %v1460, %v1456
        %v1657 = vpack.c.b16 %v1465, %v1461
        %v1658 = vpack.c.b16 %v1466, %v1462
        %v1659 = vpack.c.b16 %v1467, %v1463
        %v1660 = vpack.c.b16 %v1468, %v1464
        %v1661 = vpack.c.b16 %v1473, %v1469
        %v1662 = vpack.c.b16 %v1474, %v1470
        %v1663 = vpack.c.b16 %v1475, %v1471
        %v1664 = vpack.c.b16 %v1476, %v1472
        %v1665 = vpack.c.b16 %v1481, %v1477
        %v1666 = vpack.c.b16 %v1482, %v1478
        %v1667 = vpack.c.b16 %v1483, %v1479
        %v1668 = vpack.c.b16 %v1484, %v1480
        %v1669 = vpack.c.b16 %v1489, %v1485
        %v1670 = vpack.c.b16 %v1490, %v1486
        %v1671 = vpack.c.b16 %v1491, %v1487
        %v1672 = vpack.c.b16 %v1492, %v1488
        %v1673 = vpack.c.b16 %v1497, %v1493
        %v1674 = vpack.c.b16 %v1498, %v1494
        %v1675 = vpack.c.b16 %v1499, %v1495
        %v1676 = vpack.c.b16 %v1500, %v1496
        %v1677 = vpack.c.b16 %v1505, %v1501
        %v1678 = vpack.c.b16 %v1506, %v1502
        %v1679 = vpack.c.b16 %v1507, %v1503
        %v1680 = vpack.c.b16 %v1508, %v1504
        %v1681 = vpack.c.b16 %v1513, %v1509
        %v1682 = vpack.c.b16 %v1514, %v1510
        %v1683 = vpack.c.b16 %v1515, %v1511
        %v1684 = vpack.c.b16 %v1516, %v1512
        %v1685 = vpack.c.b16 %v1521, %v1517
        %v1686 = vpack.c.b16 %v1522, %v1518
        %v1687 = vpack.c.b16 %v1523, %v1519
        %v1688 = vpack.c.b16 %v1524, %v1520
        %v1689 = vpack.c.b16 %v1529, %v1525
        %v1690 = vpack.c.b16 %v1530, %v1526
        %v1691 = vpack.c.b16 %v1531, %v1527
        %v1692 = vpack.c.b16 %v1532, %v1528
        %v1693 = vpack.c.b16 %v1537, %v1533
        %v1694 = vpack.c.b16 %v1538, %v1534
        %v1695 = vpack.c.b16 %v1539, %v1535
        %v1696 = vpack.c.b16 %v1540, %v1536
        %v1697 = vpack.c.b16 %v1545, %v1541
        %v1698 = vpack.c.b16 %v1546, %v1542
        %v1699 = vpack.c.b16 %v1547, %v1543
        %v1700 = vpack.c.b16 %v1548, %v1544
        %v1701 = vpack.c.b16 %v1553, %v1549
        %v1702 = vpack.c.b16 %v1554, %v1550
        %v1703 = vpack.c.b16 %v1555, %v1551
        %v1704 = vpack.c.b16 %v1556, %v1552
        %v1705 = vpack.c.b16 %v1561, %v1557
        %v1706 = vpack.c.b16 %v1562, %v1558
        %v1707 = vpack.c.b16 %v1563, %v1559
        %v1708 = vpack.c.b16 %v1564, %v1560
        %v1709 = vpack.c.b16 %v1569, %v1565
        %v1710 = vpack.c.b16 %v1570, %v1566
        %v1711 = vpack.c.b16 %v1571, %v1567
        %v1712 = vpack.c.b16 %v1572, %v1568
        %v1713 = vpack.c.b16 %v1577, %v1573
        %v1714 = vpack.c.b16 %v1578, %v1574
        %v1715 = vpack.c.b16 %v1579, %v1575
        %v1716 = vpack.c.b16 %v1580, %v1576
        %v1717 = vpack.c.b16 %v1585, %v1581
        %v1718 = vpack.c.b16 %v1586, %v1582
        %v1719 = vpack.c.b16 %v1587, %v1583
        %v1720 = vpack.c.b16 %v1588, %v1584
        %v1721 = vpack.c.b16 %v1593, %v1589
        %v1722 = vpack.c.b16 %v1594, %v1590
        %v1723 = vpack.c.b16 %v1595, %v1591
        %v1724 = vpack.c.b16 %v1596, %v1592
        %1853 = vmatprep.subr.bf16.mxu0 %v1598
        %1854 = vmatpush1.bf16.msra.mxu0 %v1597
        %1855 = vmatprep.subr.bf16.mxu0 %v1602
        %1856 = vmatpush1.bf16.msra.mxu0 %v1601
        %1857 = vmatprep.subr.bf16.mxu0 %v1606
        %1858 = vmatpush1.bf16.msra.mxu0 %v1605
        %1859 = vmatprep.subr.bf16.mxu0 %v1610
        %1860 = vmatpush1.bf16.msra.mxu0 %v1609
        %1861 = vmatprep.subr.bf16.mxu0 %v1614
        %1862 = vmatpush1.bf16.msra.mxu0 %v1613
        %1863 = vmatprep.subr.bf16.mxu0 %v1618
        %1864 = vmatpush1.bf16.msra.mxu0 %v1617
        %1865 = vmatprep.subr.bf16.mxu0 %v1622
        %1866 = vmatpush1.bf16.msra.mxu0 %v1621
        %1867 = vmatprep.subr.bf16.mxu0 %v1626
        %1868 = vmatpush1.bf16.msra.mxu0 %v1625
        %1869 = vmatprep.subr.bf16.mxu0 %v1630
        %1870 = vmatpush1.bf16.msra.mxu0 %v1629
        %1871 = vmatprep.subr.bf16.mxu0 %v1634
        %1872 = vmatpush1.bf16.msra.mxu0 %v1633
        %1873 = vmatprep.subr.bf16.mxu0 %v1638
        %1874 = vmatpush1.bf16.msra.mxu0 %v1637
        %1875 = vmatprep.subr.bf16.mxu0 %v1642
        %1876 = vmatpush1.bf16.msra.mxu0 %v1641
        %1877 = vmatprep.subr.bf16.mxu0 %v1646
        %1878 = vmatpush1.bf16.msra.mxu0 %v1645
        %1879 = vmatprep.subr.bf16.mxu0 %v1650
        %1880 = vmatpush1.bf16.msra.mxu0 %v1649
        %1881 = vmatprep.subr.bf16.mxu0 %v1654
        %1882 = vmatpush1.bf16.msra.mxu0 %v1653
        %1883 = vmatprep.subr.bf16.mxu0 %v1658
        %1884 = vmatpush1.bf16.msra.mxu0 %v1657
        %1885 = vmatprep.mubr.bf16.mxu0 %v1060
        %1886 = vmatmul.mubr.bf16.gmra.mrb[0].mxu0 %v1059
        %v1887 = vpop.f32.mrb[0].mxu0
        %v1888 = vadd.f32 %v1196, %v1887
        %v1889 = vpop.f32.mrb[0].mxu0
        %v1890 = vadd.f32 %v1200, %v1889
        %v1891 = vpop.f32.mrb[0].mxu0
        %v1892 = vadd.f32 %v1196, %v1891
        %v1893 = vpop.f32.mrb[0].mxu0
        %v1894 = vadd.f32 %v1200, %v1893
        %1895 = vdwg.mxu0
        %1896 = vmatprep.subr.bf16.mxu0 %v1662
        %1897 = vmatpush1.bf16.msra.mxu0 %v1661
        %1898 = vmatprep.subr.bf16.mxu0 %v1666
        %1899 = vmatpush1.bf16.msra.mxu0 %v1665
        %1900 = vmatprep.subr.bf16.mxu0 %v1670
        %1901 = vmatpush1.bf16.msra.mxu0 %v1669
        %1902 = vmatprep.subr.bf16.mxu0 %v1674
        %1903 = vmatpush1.bf16.msra.mxu0 %v1673
        %1904 = vmatprep.subr.bf16.mxu0 %v1678
        %1905 = vmatpush1.bf16.msra.mxu0 %v1677
        %1906 = vmatprep.subr.bf16.mxu0 %v1682
        %1907 = vmatpush1.bf16.msra.mxu0 %v1681
        %1908 = vmatprep.subr.bf16.mxu0 %v1686
        %1909 = vmatpush1.bf16.msra.mxu0 %v1685
        %1910 = vmatprep.subr.bf16.mxu0 %v1690
        %1911 = vmatpush1.bf16.msra.mxu0 %v1689
        %1912 = vmatprep.subr.bf16.mxu0 %v1694
        %1913 = vmatpush1.bf16.msra.mxu0 %v1693
        %1914 = vmatprep.subr.bf16.mxu0 %v1698
        %1915 = vmatpush1.bf16.msra.mxu0 %v1697
        %1916 = vmatprep.subr.bf16.mxu0 %v1702
        %1917 = vmatpush1.bf16.msra.mxu0 %v1701
        %1918 = vmatprep.subr.bf16.mxu0 %v1706
        %1919 = vmatpush1.bf16.msra.mxu0 %v1705
        %1920 = vmatprep.subr.bf16.mxu0 %v1710
        %1921 = vmatpush1.bf16.msra.mxu0 %v1709
        %1922 = vmatprep.subr.bf16.mxu0 %v1714
        %1923 = vmatpush1.bf16.msra.mxu0 %v1713
        %1924 = vmatprep.subr.bf16.mxu0 %v1718
        %1925 = vmatpush1.bf16.msra.mxu0 %v1717
        %1926 = vmatprep.subr.bf16.mxu0 %v1722
        %1927 = vmatpush1.bf16.msra.mxu0 %v1721
        %1928 = vmatprep.mubr.bf16.mxu0 %v1062
        %1929 = vmatmul.mubr.bf16.gmra.mrb[0].mxu0 %v1061
        %v1930 = vpop.f32.mrb[0].mxu0
        %v1931 = vadd.f32 %v1888, %v1930
        %v1932 = vpop.f32.mrb[0].mxu0
        %v1933 = vadd.f32 %v1890, %v1932
        %v1934 = vpop.f32.mrb[0].mxu0
        %v1935 = vadd.f32 %v1892, %v1934
        %v1936 = vpop.f32.mrb[0].mxu0
        %v1937 = vadd.f32 %v1894, %v1936
        %1938 = vdwg.mxu0
        %1939 = vmatprep.subr.bf16.mxu0 %v1600
        %1940 = vmatpush1.bf16.msra.mxu0 %v1599
        %1941 = vmatprep.subr.bf16.mxu0 %v1604
        %1942 = vmatpush1.bf16.msra.mxu0 %v1603
        %1943 = vmatprep.subr.bf16.mxu0 %v1608
        %1944 = vmatpush1.bf16.msra.mxu0 %v1607
        %1945 = vmatprep.subr.bf16.mxu0 %v1612
        %1946 = vmatpush1.bf16.msra.mxu0 %v1611
        %1947 = vmatprep.subr.bf16.mxu0 %v1616
        %1948 = vmatpush1.bf16.msra.mxu0 %v1615
        %1949 = vmatprep.subr.bf16.mxu0 %v1620
        %1950 = vmatpush1.bf16.msra.mxu0 %v1619
        %1951 = vmatprep.subr.bf16.mxu0 %v1624
        %1952 = vmatpush1.bf16.msra.mxu0 %v1623
        %1953 = vmatprep.subr.bf16.mxu0 %v1628
        %1954 = vmatpush1.bf16.msra.mxu0 %v1627
        %1955 = vmatprep.subr.bf16.mxu0 %v1632
        %1956 = vmatpush1.bf16.msra.mxu0 %v1631
        %1957 = vmatprep.subr.bf16.mxu0 %v1636
        %1958 = vmatpush1.bf16.msra.mxu0 %v1635
        %1959 = vmatprep.subr.bf16.mxu0 %v1640
        %1960 = vmatpush1.bf16.msra.mxu0 %v1639
        %1961 = vmatprep.subr.bf16.mxu0 %v1644
        %1962 = vmatpush1.bf16.msra.mxu0 %v1643
        %1963 = vmatprep.subr.bf16.mxu0 %v1648
        %1964 = vmatpush1.bf16.msra.mxu0 %v1647
        %1965 = vmatprep.subr.bf16.mxu0 %v1652
        %1966 = vmatpush1.bf16.msra.mxu0 %v1651
        %1967 = vmatprep.subr.bf16.mxu0 %v1656
        %1968 = vmatpush1.bf16.msra.mxu0 %v1655
        %1969 = vmatprep.subr.bf16.mxu0 %v1660
        %1970 = vmatpush1.bf16.msra.mxu0 %v1659
        %1971 = vmatprep.mubr.bf16.mxu0 %v1060
        %1972 = vmatmul.mubr.bf16.gmra.mrb[0].mxu0 %v1059
        %v1973 = vpop.f32.mrb[0].mxu0
        %v1974 = vadd.f32 %v1204, %v1973
        %v1975 = vpop.f32.mrb[0].mxu0
        %v1976 = vadd.f32 %v1208, %v1975
        %v1977 = vpop.f32.mrb[0].mxu0
        %v1978 = vadd.f32 %v1204, %v1977
        %v1979 = vpop.f32.mrb[0].mxu0
        %v1980 = vadd.f32 %v1208, %v1979
        %1981 = vdwg.mxu0
        %1982 = vmatprep.subr.bf16.mxu0 %v1664
        %1983 = vmatpush1.bf16.msra.mxu0 %v1663
        %1984 = vmatprep.subr.bf16.mxu0 %v1668
        %1985 = vmatpush1.bf16.msra.mxu0 %v1667
        %1986 = vmatprep.subr.bf16.mxu0 %v1672
        %1987 = vmatpush1.bf16.msra.mxu0 %v1671
        %1988 = vmatprep.subr.bf16.mxu0 %v1676
        %1989 = vmatpush1.bf16.msra.mxu0 %v1675
        %1990 = vmatprep.subr.bf16.mxu0 %v1680
        %1991 = vmatpush1.bf16.msra.mxu0 %v1679
        %1992 = vmatprep.subr.bf16.mxu0 %v1684
        %1993 = vmatpush1.bf16.msra.mxu0 %v1683
        %1994 = vmatprep.subr.bf16.mxu0 %v1688
        %1995 = vmatpush1.bf16.msra.mxu0 %v1687
        %1996 = vmatprep.subr.bf16.mxu0 %v1692
        %1997 = vmatpush1.bf16.msra.mxu0 %v1691
        %1998 = vmatprep.subr.bf16.mxu0 %v1696
        %1999 = vmatpush1.bf16.msra.mxu0 %v1695
        %2000 = vmatprep.subr.bf16.mxu0 %v1700
        %2001 = vmatpush1.bf16.msra.mxu0 %v1699
        %2002 = vmatprep.subr.bf16.mxu0 %v1704
        %2003 = vmatpush1.bf16.msra.mxu0 %v1703
        %2004 = vmatprep.subr.bf16.mxu0 %v1708
        %2005 = vmatpush1.bf16.msra.mxu0 %v1707
        %2006 = vmatprep.subr.bf16.mxu0 %v1712
        %2007 = vmatpush1.bf16.msra.mxu0 %v1711
        %2008 = vmatprep.subr.bf16.mxu0 %v1716
        %2009 = vmatpush1.bf16.msra.mxu0 %v1715
        %2010 = vmatprep.subr.bf16.mxu0 %v1720
        %2011 = vmatpush1.bf16.msra.mxu0 %v1719
        %2012 = vmatprep.subr.bf16.mxu0 %v1724
        %2013 = vmatpush1.bf16.msra.mxu0 %v1723
        %2014 = vmatprep.mubr.bf16.mxu0 %v1062
        %2015 = vmatmul.mubr.bf16.gmra.mrb[0].mxu0 %v1061
        %v2016 = vpop.f32.mrb[0].mxu0
        %v2017 = vadd.f32 %v1974, %v2016
        %v2018 = vpop.f32.mrb[0].mxu0
        %v2019 = vadd.f32 %v1976, %v2018
        %v2020 = vpop.f32.mrb[0].mxu0
        %v2021 = vadd.f32 %v1978, %v2020
        %v2022 = vpop.f32.mrb[0].mxu0
        %v2023 = vadd.f32 %v1980, %v2022
        %2024 = vdwg.mxu0
        %2025 = vst [vmem:[%s376] sm:$0xff] %v1931
        %2026 = vst [vmem:[%s376 + $0x8] sm:$0xff] %v1933
        %2027 = vst [vmem:[%s376 + $0x10] sm:$0xff] %v2017
        %2028 = vst [vmem:[%s376 + $0x18] sm:$0xff] %v2019
        %2029 = vst [vmem:[%s376 + $0x20] sm:$0xff] %v1935
        %2030 = vst [vmem:[%s376 + $0x28] sm:$0xff] %v1937
        %2031 = vst [vmem:[%s376 + $0x30] sm:$0xff] %v2021
        %2032 = vst [vmem:[%s376 + $0x38] sm:$0xff] %v2023
        %s2033 = sand.u32 %s210, 1
        %s2034 = scalar_lea.sflag [#allocation5], %s2033
        %s2035 = sand.u32 %s210, 1
        %s2036 = smul.addr %s2035, 64
        %s2037 = scalar_lea.vmem [#allocation11], %s2036
        // Predicated region
        $region69: #{tpu_custom_call.1} parent=47 // pred_check
          %p2038 = pneg %p220
        $region70: #{tpu_custom_call.1} parent=47 // pred_check_branch
          %2040 = sbr.rel (%p2038) target = $region72
        $region71: #{tpu_custom_call.1} parent=47 // pred_region
          %s2041 = smul.u32 2, %s30
          %s2042 = smul.u32 4, %s31
          %s2044 = ssub.s32 1024, 1024
          %2045 = vsyncadd %s2034, %s2044
          %s2046 = smul.addr %s2041, 8
          %s2047 = sadd.s32 %s2042, %s2046
          %s2048 = smul.addr %s2047, 128
          %s2049 = scalar_lea.hbm %s7, %s2048
          %s2050 = sshll.u32 %s2037, 4
          %s2051 = int_to_ptr.vmem [resolvable:$true] %s2050
          %2056 = dma.vmem_to_hbm [thread:$0]  %s2051, 1024, %s2049, %s2034, 512, 1024, 32
        $region72: #{tpu_custom_call.1} parent=47 // pred_fallthru
          _
      $region48: #{tpu_custom_call.1} parent=5 // pred_fallthru
        _
      %p2057 = scmp.le.s32.totalorder 2, %s21
      // Predicated region
      $region73: #{tpu_custom_call.1} parent=5 // pred_check
        %p2058 = pneg %p2057
      $region74: #{tpu_custom_call.1} parent=5 // pred_check_branch
        %2060 = sbr.rel (%p2058) target = $region76
      $region75: #{tpu_custom_call.1} parent=5 // pred_region
        %s2061 = ssub.s32 %s21, 2
        // Predicated region
        $region77: #{tpu_custom_call.1} parent=75 // pred_check
          %p2062 = pneg %p226
        $region78: #{tpu_custom_call.1} parent=75 // pred_check_branch
          %2064 = sbr.rel (%p2062) target = $region80
        $region79: #{tpu_custom_call.1} parent=75 // pred_region
          %s2065 = sand.u32 %s211, 1
          %s2066 = scalar_lea.sflag [#allocation5], %s2065
          %s2067 = sand.u32 %s211, 1
          %s2068 = smul.addr %s2067, 64
          %s2069 = scalar_lea.vmem [#allocation11], %s2068
          %2070 = dma.done %s2066, 1024
        $region80: #{tpu_custom_call.1} parent=75 // pred_fallthru
          _
      $region76: #{tpu_custom_call.1} parent=5 // pred_fallthru
        _
    $region6: #{tpu_custom_call.1} parent=1 // loop_footer
      %s25 = sadd.s32 1, %s21
    $region7: #{tpu_custom_call.1} parent=1 // loop_footer_branch
      %20 = sbr.rel target = $region3
    $region8: #{tpu_custom_call.1} parent=1 // loop_exit
      _
    %2071 = vsyncpa [#allocation4], 1
    %s2072 = scalar_lea.sflag [#allocation4], 1
    %2073 = vsyncpa %s2072, 1
    %2074 = vsyncpa [#allocation7], 1
    %2075 = vsyncpa [#allocation10], 1
    %s2076 = scalar_lea.sflag [#allocation10], 1
    %2077 = vsyncpa %s2076, 1
    %2078 = vsyncpa [#allocation5], 1
    %s2079 = scalar_lea.sflag [#allocation5], 1
    %2080 = vsyncpa %s2079, 1

</llo_original>
